<compile_context>
chip_gen: v7x
topology: tpu7x:2x2x1
jax: 0.10.0
libtpu: 0.0.40
codegen_flags: <defaults>
</compile_context>

<pallas_src>
import functools

import jax
import jax.numpy as jnp
from jax.experimental import pallas as pl
from jax.experimental.pallas import tpu as pltpu

LN_EPS = 1e-5


def _layernorm(x, gamma, beta):
    mu = jnp.mean(x, axis=-1, keepdims=True)
    var = jnp.mean((x - mu) ** 2, axis=-1, keepdims=True)
    return (x - mu) * jax.lax.rsqrt(var + LN_EPS) * gamma + beta


def decoder_block_kernel(
    x_ref, mask_ref,
    g1_ref, b1_ref,
    wqkv_ref, bqkv_ref, wo_ref, bo_ref,
    g2_ref, b2_ref,
    w1_ref, bw1_ref, w2_ref, bw2_ref,
    out_ref, attn_ref,
    ctx_ref,
    *, num_heads, ffn_chunk,
):
    f32 = jnp.float32
    bf16 = jnp.bfloat16

    x = x_ref[0]                      # (S, D) f32
    S, D = x.shape
    H = num_heads
    dh = D // H
    scale = 1.0 / (dh ** 0.5)

    # ---- LayerNorm 1 (f32) ----
    nx = _layernorm(x, g1_ref[0], b1_ref[0])

    # ---- fused Q|K|V projection: one wide bf16 MXU matmul, f32 accumulation ----
    qkv = jnp.dot(nx.astype(bf16), wqkv_ref[...], preferred_element_type=f32) + bqkv_ref[0]
    q_b = (qkv[:, :D] * scale).astype(bf16)       # fold 1/sqrt(dh) into Q once, in f32
    k_b = qkv[:, D:2 * D].astype(bf16)
    v_b = qkv[:, 2 * D:].astype(bf16)

    # ---- additive mask bias, computed ONCE (mask arrives as int8) ----
    neg_bias = jnp.where(mask_ref[0, 0].astype(f32) > 0, 0.0, -1e9)   # (S, S) f32

    # ---- attention: per-head MXU dots; probs stored per head; ctx packed into bf16 scratch ----
    for h in range(H):
        lo = h * dh
        qh = q_b[:, lo:lo + dh]                   # (S, dh) bf16
        kh = k_b[:, lo:lo + dh]
        vh = v_b[:, lo:lo + dh]
        # q @ k^T via dot_general contracting dim 1 with dim 1 (no materialized transpose)
        s = jax.lax.dot_general(qh, kh, (((1,), (1,)), ((), ())),
                                preferred_element_type=f32)            # (S, S) f32
        s = s + neg_bias
        s_max = jnp.max(s, axis=-1, keepdims=True)
        e = jnp.exp(s - s_max)
        denom = jnp.sum(e, axis=-1, keepdims=True)
        p = e * pl.reciprocal(denom, approx=True)                      # EUP slot, ~free
        attn_ref[0, h] = p.astype(attn_ref.dtype)                      # direct per-head store
        ctx_h = jnp.dot(p.astype(bf16), vh, preferred_element_type=f32)  # (S, dh)
        ctx_ref[:, lo:lo + dh] = ctx_h.astype(bf16)                    # pack heads into (S, D)

    # ---- single K=D output projection (full MXU contraction depth) ----
    attn_out = jnp.dot(ctx_ref[...], wo_ref[...], preferred_element_type=f32)

    # ---- bias + residual (dropout1 == identity) ----
    x1 = x + attn_out + bo_ref[0]

    # ---- LayerNorm 2 (f32) ----
    nx2_b = _layernorm(x1, g2_ref[0], b2_ref[0]).astype(bf16)

    # ---- FFN: chunked over hidden dim F when beneficial, otherwise single pass ----
    F = w1_ref.shape[1]
    num_chunks = F // ffn_chunk
    if num_chunks <= 1:
        h1 = jnp.dot(nx2_b, w1_ref[...], preferred_element_type=f32) + bw1_ref[0]
        h1 = jnp.maximum(h1, 0.0)
        ffn = jnp.dot(h1.astype(bf16), w2_ref[...], preferred_element_type=f32)
    else:
        def body(c, acc):
            off = pl.multiple_of(c * ffn_chunk, ffn_chunk)
            h1 = (jnp.dot(nx2_b, w1_ref[:, pl.ds(off, ffn_chunk)],
                          preferred_element_type=f32)
                  + bw1_ref[0, pl.ds(off, ffn_chunk)])
            h1 = jnp.maximum(h1, 0.0)
            return acc + jnp.dot(h1.astype(bf16), w2_ref[pl.ds(off, ffn_chunk), :],
                                 preferred_element_type=f32)
        ffn = jax.lax.fori_loop(0, num_chunks, body, jnp.zeros((S, D), f32))
    ffn = ffn + bw2_ref[0]

    # ---- residual (dropout2 == identity), single (S, D) store ----
    out_ref[0] = (x1 + ffn).astype(out_ref.dtype)


def decoder_block(x, mask, params, num_heads, *, ffn_chunk=1024, attn_dtype=jnp.float32):
    B, S, D = x.shape
    F = params["w1"].shape[1]
    H = num_heads
    dh = D // H

    # Only chunk the FFN when it is clean: chunk divides F and is a 128-lane multiple.
    if ffn_chunk >= F or F % ffn_chunk != 0 or ffn_chunk % 128 != 0:
        ffn_chunk = F

    f32 = jnp.float32
    bf16 = jnp.bfloat16

    x = x.astype(f32)
    mask_i8 = (mask > 0).astype(jnp.int8)     # 4x smaller HBM stream than f32

    # Fuse Q|K|V weights/biases; matmul weights stored bf16 (halves HBM traffic / VMEM residency).
    wqkv = jnp.concatenate([params["wq"], params["wk"], params["wv"]], axis=1).astype(bf16)
    bqkv = jnp.concatenate([params["bq"], params["bk"], params["bv"]], axis=1).astype(f32)
    wo = params["wo"].astype(bf16)
    w1 = params["w1"].astype(bf16)
    w2 = params["w2"].astype(bf16)

    def inv_spec(shape):
        # Grid-invariant operand: single-buffered (no pointless double-buffering of weights).
        zeros = (0,) * len(shape)
        return pl.BlockSpec(shape, lambda b: zeros, pipeline_mode=pl.Buffered(1))

    shared_mask = mask_i8.shape[0] == 1
    if shared_mask:
        mask_spec = pl.BlockSpec((1, 1, S, S), lambda b: (0, 0, 0, 0),
                                 pipeline_mode=pl.Buffered(1))
    else:
        mask_spec = pl.BlockSpec((1, 1, S, S), lambda b: (b, 0, 0, 0))

    in_specs = [
        pl.BlockSpec((1, S, D), lambda b: (b, 0, 0)),   # x
        mask_spec,                                      # mask (int8)
        inv_spec((1, D)),          # g1
        inv_spec((1, D)),          # b1
        inv_spec((D, 3 * D)),      # wqkv (bf16)
        inv_spec((1, 3 * D)),      # bqkv
        inv_spec((D, D)),          # wo (bf16)
        inv_spec((1, D)),          # bo
        inv_spec((1, D)),          # g2
        inv_spec((1, D)),          # b2
        inv_spec((D, F)),          # w1 (bf16)
        inv_spec((1, F)),          # bw1
        inv_spec((F, D)),          # w2 (bf16)
        inv_spec((1, D)),          # bw2
    ]
    out_specs = (
        pl.BlockSpec((1, S, D), lambda b: (b, 0, 0)),
        pl.BlockSpec((1, H, S, S), lambda b: (b, 0, 0, 0)),
    )
    out_shape = (
        jax.ShapeDtypeStruct((B, S, D), f32),
        jax.ShapeDtypeStruct((B, H, S, S), attn_dtype),
    )

    # Advisory cost estimate so XLA schedules around this (large) custom call sensibly.
    flops = B * (2 * S * D * 3 * D        # QKV projection
                 + 4 * H * S * S * dh     # scores + p @ v
                 + 2 * S * D * D          # output projection
                 + 4 * S * D * F)         # FFN
    transcendentals = B * H * S * S       # softmax exp
    attn_itemsize = jnp.dtype(attn_dtype).itemsize
    bytes_accessed = (
        x.size * 4 + mask_i8.size
        + B * S * D * 4                                   # out
        + B * H * S * S * attn_itemsize                   # attention scores
        + (wqkv.size + wo.size + w1.size + w2.size) * 2
        + (bqkv.size + params["bo"].size + params["bw1"].size
           + params["bw2"].size + 4 * D) * 4
    )
    cost = pl.CostEstimate(flops=int(flops), transcendentals=int(transcendentals),
                           bytes_accessed=int(bytes_accessed))

    # Generation-aware VMEM limit: rough per-step need, clamped to physical capacity - headroom.
    try:
        vmem_cap = int(pltpu.get_tpu_info().vmem_capacity_bytes)
    except Exception:
        vmem_cap = 64 * 1024 * 1024
    weight_bytes = (wqkv.size + wo.size + w1.size + w2.size) * 2 + (bqkv.size + 3 * D + F) * 4
    io_block_bytes = (2 * S * D * 4                       # x (double-buffered)
                      + 2 * S * D * 4                     # out (double-buffered)
                      + 2 * H * S * S * attn_itemsize     # attn out (double-buffered)
                      + (1 if shared_mask else 2) * S * S)
    act_bytes = (4 * S * D + 3 * S * S + 6 * S * D + 2 * S * ffn_chunk) * 4 + S * D * 2
    needed = weight_bytes + io_block_bytes + act_bytes
    vmem_limit = int(min(max(2 * needed, 32 * 1024 * 1024), vmem_cap - vmem_cap // 8))

    kernel = functools.partial(decoder_block_kernel, num_heads=H, ffn_chunk=ffn_chunk)
    return pl.pallas_call(
        kernel,
        out_shape=out_shape,
        grid_spec=pltpu.PrefetchScalarGridSpec(
            num_scalar_prefetch=0,
            grid=(B,),
            in_specs=in_specs,
            out_specs=out_specs,
            scratch_shapes=[pltpu.VMEM((S, D), bf16)],    # packed per-head context
        ),
        compiler_params=pltpu.CompilerParams(
            dimension_semantics=("parallel",),
            vmem_limit_bytes=vmem_limit,
        ),
        cost_estimate=cost,
    )(
        x, mask_i8,
        params["g1"], params["b1"],
        wqkv, bqkv, wo, params["bo"],
        params["g2"], params["b2"],
        w1, params["bw1"], w2, params["bw2"],
    )


def reference(x, mask, params, num_heads):
    """Pure-f32 reference matching the PyTorch module (eval mode)."""
    B, S, D = x.shape
    dh = D // num_heads
    scale = 1.0 / (dh ** 0.5)

    nx = _layernorm(x, params["g1"], params["b1"])
    q = nx @ params["wq"] + params["bq"]
    k = nx @ params["wk"] + params["bk"]
    v = nx @ params["wv"] + params["bv"]

    def split(t):  # (B,S,D) -> (B,H,S,dh)
        return t.reshape(B, S, num_heads, dh).transpose(0, 2, 1, 3)

    qh, kh, vh = split(q), split(k), split(v)
    s = jnp.einsum("bhqd,bhkd->bhqk", qh, kh) * scale
    s = jnp.where(mask > 0, s, -1e9)
    p = jax.nn.softmax(s, axis=-1)
    ctx = jnp.einsum("bhqk,bhkd->bhqd", p, vh).transpose(0, 2, 1, 3).reshape(B, S, D)
    attn_out = ctx @ params["wo"] + params["bo"]
    x1 = x + attn_out

    nx2 = _layernorm(x1, params["g2"], params["b2"])
    h1 = jnp.maximum(nx2 @ params["w1"] + params["bw1"], 0.0)
    ffn_out = h1 @ params["w2"] + params["bw2"]
    return x1 + ffn_out, p


if __name__ == "__main__":
    B, S, D, F, H = 2, 8, 32, 64, 4
    key = jax.random.PRNGKey(0)
    ks = jax.random.split(key, 12)

    def w(k, shape, scale=0.1):
        return (scale * jax.random.normal(k, shape)).astype(jnp.float32)

    params = {
        "g1": jnp.ones((1, D), jnp.float32),
        "b1": jnp.zeros((1, D), jnp.float32),
        "wq": w(ks[0], (D, D)), "bq": w(ks[1], (1, D)),
        "wk": w(ks[2], (D, D)), "bk": w(ks[3], (1, D)),
        "wv": w(ks[4], (D, D)), "bv": w(ks[5], (1, D)),
        "wo": w(ks[6], (D, D)), "bo": w(ks[7], (1, D)),
        "g2": jnp.ones((1, D), jnp.float32),
        "b2": jnp.zeros((1, D), jnp.float32),
        "w1": w(ks[8], (D, F)), "bw1": w(ks[9], (1, F)),
        "w2": w(ks[10], (F, D)), "bw2": w(ks[11], (1, D)),
    }

    x = jax.random.normal(jax.random.PRNGKey(1), (B, S, D), jnp.float32)
    # causal self-attention mask, shape (B, 1, S, S), 1 = keep, 0 = masked
    causal = jnp.tril(jnp.ones((S, S), jnp.float32))
    mask = jnp.broadcast_to(causal, (B, 1, S, S))

    out, attn = decoder_block(x, mask, params, H)
    jax.block_until_ready((out, attn))

    ref_out, ref_attn = reference(x, mask, params, H)
    # bf16 MXU inputs (f32 accumulation) -> compare against the f32 reference with bf16-level tolerance.
    assert jnp.allclose(out, ref_out, atol=3e-2, rtol=3e-2), "output mismatch"
    assert jnp.allclose(attn, ref_attn, atol=1e-2, rtol=1e-2), "attention score mismatch"

    print("KERNEL_OK")
</pallas_src>

<mosaic_0001>
module attributes {stable_mosaic.version = 11 : i64} {
  func.func @decoder_block_kernel(%arg0: i32, %arg1: memref<1x8x32xf32, #tpu.memory_space<vmem>>, %arg2: memref<1x1x8x8xi8, #tpu.memory_space<vmem>>, %arg3: memref<1x32xf32, #tpu.memory_space<vmem>>, %arg4: memref<1x32xf32, #tpu.memory_space<vmem>>, %arg5: memref<32x96xbf16, #tpu.memory_space<vmem>>, %arg6: memref<1x96xf32, #tpu.memory_space<vmem>>, %arg7: memref<32x32xbf16, #tpu.memory_space<vmem>>, %arg8: memref<1x32xf32, #tpu.memory_space<vmem>>, %arg9: memref<1x32xf32, #tpu.memory_space<vmem>>, %arg10: memref<1x32xf32, #tpu.memory_space<vmem>>, %arg11: memref<32x64xbf16, #tpu.memory_space<vmem>>, %arg12: memref<1x64xf32, #tpu.memory_space<vmem>>, %arg13: memref<64x32xbf16, #tpu.memory_space<vmem>>, %arg14: memref<1x32xf32, #tpu.memory_space<vmem>>, %arg15: memref<1x8x32xf32, #tpu.memory_space<vmem>>, %arg16: memref<1x4x8x8xf32, #tpu.memory_space<vmem>>, %arg17: memref<8x32xbf16, #tpu.memory_space<vmem>>) attributes {dimension_semantics = [#tpu.dimension_semantics<parallel>], iteration_bounds = array<i64: 2>, scalar_prefetch = 0 : i64, scratch_operands = 1 : i64, tpu.core_type = #tpu.core_type<tc>, window_params = [{transform_indices = @transform_0, window_bounds = array<i64: 1, 8, 32>}, {transform_indices = @transform_1, window_bounds = array<i64: 1, 1, 8, 8>}, {pipeline_mode = #tpu.pipeline_mode<synchronous>, transform_indices = @transform_2, window_bounds = array<i64: 1, 32>}, {pipeline_mode = #tpu.pipeline_mode<synchronous>, transform_indices = @transform_3, window_bounds = array<i64: 1, 32>}, {pipeline_mode = #tpu.pipeline_mode<synchronous>, transform_indices = @transform_4, window_bounds = array<i64: 32, 96>}, {pipeline_mode = #tpu.pipeline_mode<synchronous>, transform_indices = @transform_5, window_bounds = array<i64: 1, 96>}, {pipeline_mode = #tpu.pipeline_mode<synchronous>, transform_indices = @transform_6, window_bounds = array<i64: 32, 32>}, {pipeline_mode = #tpu.pipeline_mode<synchronous>, transform_indices = @transform_7, window_bounds = array<i64: 1, 32>}, {pipeline_mode = #tpu.pipeline_mode<synchronous>, transform_indices = @transform_8, window_bounds = array<i64: 1, 32>}, {pipeline_mode = #tpu.pipeline_mode<synchronous>, transform_indices = @transform_9, window_bounds = array<i64: 1, 32>}, {pipeline_mode = #tpu.pipeline_mode<synchronous>, transform_indices = @transform_10, window_bounds = array<i64: 32, 64>}, {pipeline_mode = #tpu.pipeline_mode<synchronous>, transform_indices = @transform_11, window_bounds = array<i64: 1, 64>}, {pipeline_mode = #tpu.pipeline_mode<synchronous>, transform_indices = @transform_12, window_bounds = array<i64: 64, 32>}, {pipeline_mode = #tpu.pipeline_mode<synchronous>, transform_indices = @transform_13, window_bounds = array<i64: 1, 32>}, {transform_indices = @transform_14, window_bounds = array<i64: 1, 8, 32>}, {transform_indices = @transform_15, window_bounds = array<i64: 1, 4, 8, 8>}]} {
    %c0 = arith.constant 0 : index
    %c0_0 = arith.constant 0 : index
    %c0_1 = arith.constant 0 : index
    %0 = vector.load %arg1[%c0, %c0_0, %c0_1] : memref<1x8x32xf32, #tpu.memory_space<vmem>>, vector<1x8x32xf32>
    %1 = vector.shape_cast %0 : vector<1x8x32xf32> to vector<8x32xf32>
    %c0_2 = arith.constant 0 : index
    %c0_3 = arith.constant 0 : index
    %2 = vector.load %arg3[%c0_2, %c0_3] : memref<1x32xf32, #tpu.memory_space<vmem>>, vector<1x32xf32>
    %3 = vector.shape_cast %2 : vector<1x32xf32> to vector<32xf32>
    %c0_4 = arith.constant 0 : index
    %c0_5 = arith.constant 0 : index
    %4 = vector.load %arg4[%c0_4, %c0_5] : memref<1x32xf32, #tpu.memory_space<vmem>>, vector<1x32xf32>
    %5 = vector.shape_cast %4 : vector<1x32xf32> to vector<32xf32>
    %cst = arith.constant dense<0.000000e+00> : vector<8xf32>
    %6 = vector.multi_reduction <add>, %1, %cst [1] : vector<8x32xf32> to vector<8xf32>
    %7 = vector.shape_cast %6 : vector<8xf32> to vector<8x1xf32>
    %cst_6 = arith.constant 3.200000e+01 : f32
    %8 = vector.broadcast %cst_6 : f32 to vector<8x1xf32>
    %9 = arith.divf %7, %8 : vector<8x1xf32>
    %10 = vector.broadcast %9 : vector<8x1xf32> to vector<8x32xf32>
    %11 = arith.subf %1, %10 : vector<8x32xf32>
    %12 = arith.mulf %11, %11 : vector<8x32xf32>
    %cst_7 = arith.constant dense<0.000000e+00> : vector<8xf32>
    %13 = vector.multi_reduction <add>, %12, %cst_7 [1] : vector<8x32xf32> to vector<8xf32>
    %14 = vector.shape_cast %13 : vector<8xf32> to vector<8x1xf32>
    %cst_8 = arith.constant 3.200000e+01 : f32
    %15 = vector.broadcast %cst_8 : f32 to vector<8x1xf32>
    %16 = arith.divf %14, %15 : vector<8x1xf32>
    %17 = vector.broadcast %9 : vector<8x1xf32> to vector<8x32xf32>
    %18 = arith.subf %1, %17 : vector<8x32xf32>
    %cst_9 = arith.constant 9.99999974E-6 : f32
    %19 = vector.broadcast %cst_9 : f32 to vector<8x1xf32>
    %20 = arith.addf %16, %19 : vector<8x1xf32>
    %21 = math.rsqrt %20 : vector<8x1xf32>
    %22 = vector.broadcast %21 : vector<8x1xf32> to vector<8x32xf32>
    %23 = arith.mulf %18, %22 : vector<8x32xf32>
    %24 = vector.shape_cast %3 : vector<32xf32> to vector<1x32xf32>
    %25 = vector.broadcast %24 : vector<1x32xf32> to vector<8x32xf32>
    %26 = arith.mulf %23, %25 : vector<8x32xf32>
    %27 = vector.shape_cast %5 : vector<32xf32> to vector<1x32xf32>
    %28 = vector.broadcast %27 : vector<1x32xf32> to vector<8x32xf32>
    %29 = arith.addf %26, %28 : vector<8x32xf32>
    %30 = arith.truncf %29 : vector<8x32xf32> to vector<8x32xbf16>
    %c0_10 = arith.constant 0 : index
    %c0_11 = arith.constant 0 : index
    %31 = vector.load %arg5[%c0_10, %c0_11] : memref<32x96xbf16, #tpu.memory_space<vmem>>, vector<32x96xbf16>
    %cst_12 = arith.constant dense<0.000000e+00> : vector<8x96xf32>
    %32 = tpu.matmul %30, %31, %cst_12 {dimension_numbers = #tpu.dot_dimension_numbers<[1], [0], [0], [1], [0, 0, 1, 1], [], []>} : vector<8x32xbf16>, vector<32x96xbf16>, vector<8x96xf32> -> vector<8x96xf32>
    %c0_13 = arith.constant 0 : index
    %c0_14 = arith.constant 0 : index
    %33 = vector.load %arg6[%c0_13, %c0_14] : memref<1x96xf32, #tpu.memory_space<vmem>>, vector<1x96xf32>
    %34 = vector.shape_cast %33 : vector<1x96xf32> to vector<96xf32>
    %35 = vector.shape_cast %34 : vector<96xf32> to vector<1x96xf32>
    %36 = vector.broadcast %35 : vector<1x96xf32> to vector<8x96xf32>
    %37 = arith.addf %32, %36 : vector<8x96xf32>
    %38 = vector.extract_strided_slice %37 {offsets = [0, 0], sizes = [8, 32], strides = [1, 1]} : vector<8x96xf32> to vector<8x32xf32>
    %cst_15 = arith.constant 0.353553385 : f32
    %39 = vector.broadcast %cst_15 : f32 to vector<8x32xf32>
    %40 = arith.mulf %38, %39 : vector<8x32xf32>
    %41 = arith.truncf %40 : vector<8x32xf32> to vector<8x32xbf16>
    %42 = vector.extract_strided_slice %37 {offsets = [0, 32], sizes = [8, 32], strides = [1, 1]} : vector<8x96xf32> to vector<8x32xf32>
    %43 = arith.truncf %42 : vector<8x32xf32> to vector<8x32xbf16>
    %44 = vector.extract_strided_slice %37 {offsets = [0, 64], sizes = [8, 32], strides = [1, 1]} : vector<8x96xf32> to vector<8x32xf32>
    %45 = arith.truncf %44 : vector<8x32xf32> to vector<8x32xbf16>
    %c0_16 = arith.constant 0 : index
    %c0_17 = arith.constant 0 : index
    %c0_18 = arith.constant 0 : index
    %c0_19 = arith.constant 0 : index
    %46 = vector.load %arg2[%c0_16, %c0_17, %c0_18, %c0_19] : memref<1x1x8x8xi8, #tpu.memory_space<vmem>>, vector<1x1x8x8xi8>
    %47 = vector.shape_cast %46 : vector<1x1x8x8xi8> to vector<8x8xi8>
    %48 = arith.sitofp %47 : vector<8x8xi8> to vector<8x8xf32>
    %cst_20 = arith.constant 0.000000e+00 : f32
    %49 = vector.broadcast %cst_20 : f32 to vector<8x8xf32>
    %50 = arith.cmpf ogt, %48, %49 : vector<8x8xf32>
    %cst_21 = arith.constant 0.000000e+00 : f32
    %cst_22 = arith.constant -1.000000e+09 : f32
    %51 = vector.broadcast %cst_21 : f32 to vector<8x8xf32>
    %52 = vector.broadcast %cst_22 : f32 to vector<8x8xf32>
    %53 = arith.select %50, %51, %52 : vector<8x8xi1>, vector<8x8xf32>
    %54 = vector.extract_strided_slice %41 {offsets = [0, 0], sizes = [8, 8], strides = [1, 1]} : vector<8x32xbf16> to vector<8x8xbf16>
    %55 = vector.extract_strided_slice %43 {offsets = [0, 0], sizes = [8, 8], strides = [1, 1]} : vector<8x32xbf16> to vector<8x8xbf16>
    %56 = vector.extract_strided_slice %45 {offsets = [0, 0], sizes = [8, 8], strides = [1, 1]} : vector<8x32xbf16> to vector<8x8xbf16>
    %cst_23 = arith.constant dense<0.000000e+00> : vector<8x8xf32>
    %57 = tpu.matmul %54, %55, %cst_23 {dimension_numbers = #tpu.dot_dimension_numbers<[1], [1], [0], [0], [0, 0, 1, 0], [], []>} : vector<8x8xbf16>, vector<8x8xbf16>, vector<8x8xf32> -> vector<8x8xf32>
    %58 = arith.addf %57, %53 : vector<8x8xf32>
    %cst_24 = arith.constant dense<0xFF800000> : vector<8xf32>
    %59 = vector.multi_reduction <maximumf>, %58, %cst_24 [1] : vector<8x8xf32> to vector<8xf32>
    %60 = vector.shape_cast %59 : vector<8xf32> to vector<8x1xf32>
    %61 = vector.broadcast %60 : vector<8x1xf32> to vector<8x8xf32>
    %62 = arith.subf %58, %61 : vector<8x8xf32>
    %63 = math.exp %62 : vector<8x8xf32>
    %cst_25 = arith.constant dense<0.000000e+00> : vector<8xf32>
    %64 = vector.multi_reduction <add>, %63, %cst_25 [1] : vector<8x8xf32> to vector<8xf32>
    %65 = vector.shape_cast %64 : vector<8xf32> to vector<8x1xf32>
    %66 = tpu.reciprocal %65 {approx = true} : vector<8x1xf32> -> vector<8x1xf32>
    %67 = vector.broadcast %66 : vector<8x1xf32> to vector<8x8xf32>
    %68 = arith.mulf %63, %67 : vector<8x8xf32>
    %c0_26 = arith.constant 0 : index
    %c0_27 = arith.constant 0 : index
    %c0_28 = arith.constant 0 : index
    %c0_29 = arith.constant 0 : index
    %69 = vector.load %arg16[%c0_26, %c0_27, %c0_28, %c0_29] : memref<1x4x8x8xf32, #tpu.memory_space<vmem>>, vector<1x1x8x8xf32>
    %70 = vector.shape_cast %69 : vector<1x1x8x8xf32> to vector<8x8xf32>
    %71 = vector.shape_cast %68 : vector<8x8xf32> to vector<1x1x8x8xf32>
    tpu.vector_store %arg16[%c0_26, %c0_27, %c0_28, %c0_29], %71 {strides = array<i32>} : memref<1x4x8x8xf32, #tpu.memory_space<vmem>>, vector<1x1x8x8xf32>,
    %72 = arith.truncf %68 : vector<8x8xf32> to vector<8x8xbf16>
    %cst_30 = arith.constant dense<0.000000e+00> : vector<8x8xf32>
    %73 = tpu.matmul %72, %56, %cst_30 {dimension_numbers = #tpu.dot_dimension_numbers<[1], [0], [0], [1], [0, 0, 1, 1], [], []>} : vector<8x8xbf16>, vector<8x8xbf16>, vector<8x8xf32> -> vector<8x8xf32>
    %74 = arith.truncf %73 : vector<8x8xf32> to vector<8x8xbf16>
    %c0_31 = arith.constant 0 : index
    %c0_32 = arith.constant 0 : index
    %75 = vector.load %arg17[%c0_31, %c0_32] : memref<8x32xbf16, #tpu.memory_space<vmem>>, vector<8x8xbf16>
    tpu.vector_store %arg17[%c0_31, %c0_32], %74 {strides = array<i32>} : memref<8x32xbf16, #tpu.memory_space<vmem>>, vector<8x8xbf16>,
    %76 = vector.extract_strided_slice %41 {offsets = [0, 8], sizes = [8, 8], strides = [1, 1]} : vector<8x32xbf16> to vector<8x8xbf16>
    %77 = vector.extract_strided_slice %43 {offsets = [0, 8], sizes = [8, 8], strides = [1, 1]} : vector<8x32xbf16> to vector<8x8xbf16>
    %78 = vector.extract_strided_slice %45 {offsets = [0, 8], sizes = [8, 8], strides = [1, 1]} : vector<8x32xbf16> to vector<8x8xbf16>
    %cst_33 = arith.constant dense<0.000000e+00> : vector<8x8xf32>
    %79 = tpu.matmul %76, %77, %cst_33 {dimension_numbers = #tpu.dot_dimension_numbers<[1], [1], [0], [0], [0, 0, 1, 0], [], []>} : vector<8x8xbf16>, vector<8x8xbf16>, vector<8x8xf32> -> vector<8x8xf32>
    %80 = arith.addf %79, %53 : vector<8x8xf32>
    %cst_34 = arith.constant dense<0xFF800000> : vector<8xf32>
    %81 = vector.multi_reduction <maximumf>, %80, %cst_34 [1] : vector<8x8xf32> to vector<8xf32>
    %82 = vector.shape_cast %81 : vector<8xf32> to vector<8x1xf32>
    %83 = vector.broadcast %82 : vector<8x1xf32> to vector<8x8xf32>
    %84 = arith.subf %80, %83 : vector<8x8xf32>
    %85 = math.exp %84 : vector<8x8xf32>
    %cst_35 = arith.constant dense<0.000000e+00> : vector<8xf32>
    %86 = vector.multi_reduction <add>, %85, %cst_35 [1] : vector<8x8xf32> to vector<8xf32>
    %87 = vector.shape_cast %86 : vector<8xf32> to vector<8x1xf32>
    %88 = tpu.reciprocal %87 {approx = true} : vector<8x1xf32> -> vector<8x1xf32>
    %89 = vector.broadcast %88 : vector<8x1xf32> to vector<8x8xf32>
    %90 = arith.mulf %85, %89 : vector<8x8xf32>
    %c0_36 = arith.constant 0 : index
    %c1 = arith.constant 1 : index
    %c0_37 = arith.constant 0 : index
    %c0_38 = arith.constant 0 : index
    %91 = vector.load %arg16[%c0_36, %c1, %c0_37, %c0_38] : memref<1x4x8x8xf32, #tpu.memory_space<vmem>>, vector<1x1x8x8xf32>
    %92 = vector.shape_cast %91 : vector<1x1x8x8xf32> to vector<8x8xf32>
    %93 = vector.shape_cast %90 : vector<8x8xf32> to vector<1x1x8x8xf32>
    tpu.vector_store %arg16[%c0_36, %c1, %c0_37, %c0_38], %93 {strides = array<i32>} : memref<1x4x8x8xf32, #tpu.memory_space<vmem>>, vector<1x1x8x8xf32>,
    %94 = arith.truncf %90 : vector<8x8xf32> to vector<8x8xbf16>
    %cst_39 = arith.constant dense<0.000000e+00> : vector<8x8xf32>
    %95 = tpu.matmul %94, %78, %cst_39 {dimension_numbers = #tpu.dot_dimension_numbers<[1], [0], [0], [1], [0, 0, 1, 1], [], []>} : vector<8x8xbf16>, vector<8x8xbf16>, vector<8x8xf32> -> vector<8x8xf32>
    %96 = arith.truncf %95 : vector<8x8xf32> to vector<8x8xbf16>
    %c0_40 = arith.constant 0 : index
    %c8 = arith.constant 8 : index
    %97 = vector.load %arg17[%c0_40, %c8] : memref<8x32xbf16, #tpu.memory_space<vmem>>, vector<8x8xbf16>
    tpu.vector_store %arg17[%c0_40, %c8], %96 {strides = array<i32>} : memref<8x32xbf16, #tpu.memory_space<vmem>>, vector<8x8xbf16>,
    %98 = vector.extract_strided_slice %41 {offsets = [0, 16], sizes = [8, 8], strides = [1, 1]} : vector<8x32xbf16> to vector<8x8xbf16>
    %99 = vector.extract_strided_slice %43 {offsets = [0, 16], sizes = [8, 8], strides = [1, 1]} : vector<8x32xbf16> to vector<8x8xbf16>
    %100 = vector.extract_strided_slice %45 {offsets = [0, 16], sizes = [8, 8], strides = [1, 1]} : vector<8x32xbf16> to vector<8x8xbf16>
    %cst_41 = arith.constant dense<0.000000e+00> : vector<8x8xf32>
    %101 = tpu.matmul %98, %99, %cst_41 {dimension_numbers = #tpu.dot_dimension_numbers<[1], [1], [0], [0], [0, 0, 1, 0], [], []>} : vector<8x8xbf16>, vector<8x8xbf16>, vector<8x8xf32> -> vector<8x8xf32>
    %102 = arith.addf %101, %53 : vector<8x8xf32>
    %cst_42 = arith.constant dense<0xFF800000> : vector<8xf32>
    %103 = vector.multi_reduction <maximumf>, %102, %cst_42 [1] : vector<8x8xf32> to vector<8xf32>
    %104 = vector.shape_cast %103 : vector<8xf32> to vector<8x1xf32>
    %105 = vector.broadcast %104 : vector<8x1xf32> to vector<8x8xf32>
    %106 = arith.subf %102, %105 : vector<8x8xf32>
    %107 = math.exp %106 : vector<8x8xf32>
    %cst_43 = arith.constant dense<0.000000e+00> : vector<8xf32>
    %108 = vector.multi_reduction <add>, %107, %cst_43 [1] : vector<8x8xf32> to vector<8xf32>
    %109 = vector.shape_cast %108 : vector<8xf32> to vector<8x1xf32>
    %110 = tpu.reciprocal %109 {approx = true} : vector<8x1xf32> -> vector<8x1xf32>
    %111 = vector.broadcast %110 : vector<8x1xf32> to vector<8x8xf32>
    %112 = arith.mulf %107, %111 : vector<8x8xf32>
    %c0_44 = arith.constant 0 : index
    %c2 = arith.constant 2 : index
    %c0_45 = arith.constant 0 : index
    %c0_46 = arith.constant 0 : index
    %113 = vector.load %arg16[%c0_44, %c2, %c0_45, %c0_46] : memref<1x4x8x8xf32, #tpu.memory_space<vmem>>, vector<1x1x8x8xf32>
    %114 = vector.shape_cast %113 : vector<1x1x8x8xf32> to vector<8x8xf32>
    %115 = vector.shape_cast %112 : vector<8x8xf32> to vector<1x1x8x8xf32>
    tpu.vector_store %arg16[%c0_44, %c2, %c0_45, %c0_46], %115 {strides = array<i32>} : memref<1x4x8x8xf32, #tpu.memory_space<vmem>>, vector<1x1x8x8xf32>,
    %116 = arith.truncf %112 : vector<8x8xf32> to vector<8x8xbf16>
    %cst_47 = arith.constant dense<0.000000e+00> : vector<8x8xf32>
    %117 = tpu.matmul %116, %100, %cst_47 {dimension_numbers = #tpu.dot_dimension_numbers<[1], [0], [0], [1], [0, 0, 1, 1], [], []>} : vector<8x8xbf16>, vector<8x8xbf16>, vector<8x8xf32> -> vector<8x8xf32>
    %118 = arith.truncf %117 : vector<8x8xf32> to vector<8x8xbf16>
    %c0_48 = arith.constant 0 : index
    %c16 = arith.constant 16 : index
    %119 = vector.load %arg17[%c0_48, %c16] : memref<8x32xbf16, #tpu.memory_space<vmem>>, vector<8x8xbf16>
    tpu.vector_store %arg17[%c0_48, %c16], %118 {strides = array<i32>} : memref<8x32xbf16, #tpu.memory_space<vmem>>, vector<8x8xbf16>,
    %120 = vector.extract_strided_slice %41 {offsets = [0, 24], sizes = [8, 8], strides = [1, 1]} : vector<8x32xbf16> to vector<8x8xbf16>
    %121 = vector.extract_strided_slice %43 {offsets = [0, 24], sizes = [8, 8], strides = [1, 1]} : vector<8x32xbf16> to vector<8x8xbf16>
    %122 = vector.extract_strided_slice %45 {offsets = [0, 24], sizes = [8, 8], strides = [1, 1]} : vector<8x32xbf16> to vector<8x8xbf16>
    %cst_49 = arith.constant dense<0.000000e+00> : vector<8x8xf32>
    %123 = tpu.matmul %120, %121, %cst_49 {dimension_numbers = #tpu.dot_dimension_numbers<[1], [1], [0], [0], [0, 0, 1, 0], [], []>} : vector<8x8xbf16>, vector<8x8xbf16>, vector<8x8xf32> -> vector<8x8xf32>
    %124 = arith.addf %123, %53 : vector<8x8xf32>
    %cst_50 = arith.constant dense<0xFF800000> : vector<8xf32>
    %125 = vector.multi_reduction <maximumf>, %124, %cst_50 [1] : vector<8x8xf32> to vector<8xf32>
    %126 = vector.shape_cast %125 : vector<8xf32> to vector<8x1xf32>
    %127 = vector.broadcast %126 : vector<8x1xf32> to vector<8x8xf32>
    %128 = arith.subf %124, %127 : vector<8x8xf32>
    %129 = math.exp %128 : vector<8x8xf32>
    %cst_51 = arith.constant dense<0.000000e+00> : vector<8xf32>
    %130 = vector.multi_reduction <add>, %129, %cst_51 [1] : vector<8x8xf32> to vector<8xf32>
    %131 = vector.shape_cast %130 : vector<8xf32> to vector<8x1xf32>
    %132 = tpu.reciprocal %131 {approx = true} : vector<8x1xf32> -> vector<8x1xf32>
    %133 = vector.broadcast %132 : vector<8x1xf32> to vector<8x8xf32>
    %134 = arith.mulf %129, %133 : vector<8x8xf32>
    %c0_52 = arith.constant 0 : index
    %c3 = arith.constant 3 : index
    %c0_53 = arith.constant 0 : index
    %c0_54 = arith.constant 0 : index
    %135 = vector.load %arg16[%c0_52, %c3, %c0_53, %c0_54] : memref<1x4x8x8xf32, #tpu.memory_space<vmem>>, vector<1x1x8x8xf32>
    %136 = vector.shape_cast %135 : vector<1x1x8x8xf32> to vector<8x8xf32>
    %137 = vector.shape_cast %134 : vector<8x8xf32> to vector<1x1x8x8xf32>
    tpu.vector_store %arg16[%c0_52, %c3, %c0_53, %c0_54], %137 {strides = array<i32>} : memref<1x4x8x8xf32, #tpu.memory_space<vmem>>, vector<1x1x8x8xf32>,
    %138 = arith.truncf %134 : vector<8x8xf32> to vector<8x8xbf16>
    %cst_55 = arith.constant dense<0.000000e+00> : vector<8x8xf32>
    %139 = tpu.matmul %138, %122, %cst_55 {dimension_numbers = #tpu.dot_dimension_numbers<[1], [0], [0], [1], [0, 0, 1, 1], [], []>} : vector<8x8xbf16>, vector<8x8xbf16>, vector<8x8xf32> -> vector<8x8xf32>
    %140 = arith.truncf %139 : vector<8x8xf32> to vector<8x8xbf16>
    %c0_56 = arith.constant 0 : index
    %c24 = arith.constant 24 : index
    %141 = vector.load %arg17[%c0_56, %c24] : memref<8x32xbf16, #tpu.memory_space<vmem>>, vector<8x8xbf16>
    tpu.vector_store %arg17[%c0_56, %c24], %140 {strides = array<i32>} : memref<8x32xbf16, #tpu.memory_space<vmem>>, vector<8x8xbf16>,
    %c0_57 = arith.constant 0 : index
    %c0_58 = arith.constant 0 : index
    %142 = vector.load %arg17[%c0_57, %c0_58] : memref<8x32xbf16, #tpu.memory_space<vmem>>, vector<8x32xbf16>
    %c0_59 = arith.constant 0 : index
    %c0_60 = arith.constant 0 : index
    %143 = vector.load %arg7[%c0_59, %c0_60] : memref<32x32xbf16, #tpu.memory_space<vmem>>, vector<32x32xbf16>
    %cst_61 = arith.constant dense<0.000000e+00> : vector<8x32xf32>
    %144 = tpu.matmul %142, %143, %cst_61 {dimension_numbers = #tpu.dot_dimension_numbers<[1], [0], [0], [1], [0, 0, 1, 1], [], []>} : vector<8x32xbf16>, vector<32x32xbf16>, vector<8x32xf32> -> vector<8x32xf32>
    %145 = arith.addf %1, %144 : vector<8x32xf32>
    %c0_62 = arith.constant 0 : index
    %c0_63 = arith.constant 0 : index
    %146 = vector.load %arg8[%c0_62, %c0_63] : memref<1x32xf32, #tpu.memory_space<vmem>>, vector<1x32xf32>
    %147 = vector.shape_cast %146 : vector<1x32xf32> to vector<32xf32>
    %148 = vector.shape_cast %147 : vector<32xf32> to vector<1x32xf32>
    %149 = vector.broadcast %148 : vector<1x32xf32> to vector<8x32xf32>
    %150 = arith.addf %145, %149 : vector<8x32xf32>
    %c0_64 = arith.constant 0 : index
    %c0_65 = arith.constant 0 : index
    %151 = vector.load %arg9[%c0_64, %c0_65] : memref<1x32xf32, #tpu.memory_space<vmem>>, vector<1x32xf32>
    %152 = vector.shape_cast %151 : vector<1x32xf32> to vector<32xf32>
    %c0_66 = arith.constant 0 : index
    %c0_67 = arith.constant 0 : index
    %153 = vector.load %arg10[%c0_66, %c0_67] : memref<1x32xf32, #tpu.memory_space<vmem>>, vector<1x32xf32>
    %154 = vector.shape_cast %153 : vector<1x32xf32> to vector<32xf32>
    %cst_68 = arith.constant dense<0.000000e+00> : vector<8xf32>
    %155 = vector.multi_reduction <add>, %150, %cst_68 [1] : vector<8x32xf32> to vector<8xf32>
    %156 = vector.shape_cast %155 : vector<8xf32> to vector<8x1xf32>
    %cst_69 = arith.constant 3.200000e+01 : f32
    %157 = vector.broadcast %cst_69 : f32 to vector<8x1xf32>
    %158 = arith.divf %156, %157 : vector<8x1xf32>
    %159 = vector.broadcast %158 : vector<8x1xf32> to vector<8x32xf32>
    %160 = arith.subf %150, %159 : vector<8x32xf32>
    %161 = arith.mulf %160, %160 : vector<8x32xf32>
    %cst_70 = arith.constant dense<0.000000e+00> : vector<8xf32>
    %162 = vector.multi_reduction <add>, %161, %cst_70 [1] : vector<8x32xf32> to vector<8xf32>
    %163 = vector.shape_cast %162 : vector<8xf32> to vector<8x1xf32>
    %cst_71 = arith.constant 3.200000e+01 : f32
    %164 = vector.broadcast %cst_71 : f32 to vector<8x1xf32>
    %165 = arith.divf %163, %164 : vector<8x1xf32>
    %166 = vector.broadcast %158 : vector<8x1xf32> to vector<8x32xf32>
    %167 = arith.subf %150, %166 : vector<8x32xf32>
    %cst_72 = arith.constant 9.99999974E-6 : f32
    %168 = vector.broadcast %cst_72 : f32 to vector<8x1xf32>
    %169 = arith.addf %165, %168 : vector<8x1xf32>
    %170 = math.rsqrt %169 : vector<8x1xf32>
    %171 = vector.broadcast %170 : vector<8x1xf32> to vector<8x32xf32>
    %172 = arith.mulf %167, %171 : vector<8x32xf32>
    %173 = vector.shape_cast %152 : vector<32xf32> to vector<1x32xf32>
    %174 = vector.broadcast %173 : vector<1x32xf32> to vector<8x32xf32>
    %175 = arith.mulf %172, %174 : vector<8x32xf32>
    %176 = vector.shape_cast %154 : vector<32xf32> to vector<1x32xf32>
    %177 = vector.broadcast %176 : vector<1x32xf32> to vector<8x32xf32>
    %178 = arith.addf %175, %177 : vector<8x32xf32>
    %179 = arith.truncf %178 : vector<8x32xf32> to vector<8x32xbf16>
    %c0_73 = arith.constant 0 : index
    %c0_74 = arith.constant 0 : index
    %180 = vector.load %arg11[%c0_73, %c0_74] : memref<32x64xbf16, #tpu.memory_space<vmem>>, vector<32x64xbf16>
    %cst_75 = arith.constant dense<0.000000e+00> : vector<8x64xf32>
    %181 = tpu.matmul %179, %180, %cst_75 {dimension_numbers = #tpu.dot_dimension_numbers<[1], [0], [0], [1], [0, 0, 1, 1], [], []>} : vector<8x32xbf16>, vector<32x64xbf16>, vector<8x64xf32> -> vector<8x64xf32>
    %c0_76 = arith.constant 0 : index
    %c0_77 = arith.constant 0 : index
    %182 = vector.load %arg12[%c0_76, %c0_77] : memref<1x64xf32, #tpu.memory_space<vmem>>, vector<1x64xf32>
    %183 = vector.shape_cast %182 : vector<1x64xf32> to vector<64xf32>
    %184 = vector.shape_cast %183 : vector<64xf32> to vector<1x64xf32>
    %185 = vector.broadcast %184 : vector<1x64xf32> to vector<8x64xf32>
    %186 = arith.addf %181, %185 : vector<8x64xf32>
    %cst_78 = arith.constant 0.000000e+00 : f32
    %187 = vector.broadcast %cst_78 : f32 to vector<8x64xf32>
    %188 = arith.maximumf %186, %187 : vector<8x64xf32>
    %189 = arith.truncf %188 : vector<8x64xf32> to vector<8x64xbf16>
    %c0_79 = arith.constant 0 : index
    %c0_80 = arith.constant 0 : index
    %190 = vector.load %arg13[%c0_79, %c0_80] : memref<64x32xbf16, #tpu.memory_space<vmem>>, vector<64x32xbf16>
    %cst_81 = arith.constant dense<0.000000e+00> : vector<8x32xf32>
    %191 = tpu.matmul %189, %190, %cst_81 {dimension_numbers = #tpu.dot_dimension_numbers<[1], [0], [0], [1], [0, 0, 1, 1], [], []>} : vector<8x64xbf16>, vector<64x32xbf16>, vector<8x32xf32> -> vector<8x32xf32>
    %c0_82 = arith.constant 0 : index
    %c0_83 = arith.constant 0 : index
    %192 = vector.load %arg14[%c0_82, %c0_83] : memref<1x32xf32, #tpu.memory_space<vmem>>, vector<1x32xf32>
    %193 = vector.shape_cast %192 : vector<1x32xf32> to vector<32xf32>
    %194 = vector.shape_cast %193 : vector<32xf32> to vector<1x32xf32>
    %195 = vector.broadcast %194 : vector<1x32xf32> to vector<8x32xf32>
    %196 = arith.addf %191, %195 : vector<8x32xf32>
    %197 = arith.addf %150, %196 : vector<8x32xf32>
    %c0_84 = arith.constant 0 : index
    %c0_85 = arith.constant 0 : index
    %c0_86 = arith.constant 0 : index
    %198 = vector.load %arg15[%c0_84, %c0_85, %c0_86] : memref<1x8x32xf32, #tpu.memory_space<vmem>>, vector<1x8x32xf32>
    %199 = vector.shape_cast %198 : vector<1x8x32xf32> to vector<8x32xf32>
    %200 = vector.shape_cast %197 : vector<8x32xf32> to vector<1x8x32xf32>
    tpu.vector_store %arg15[%c0_84, %c0_85, %c0_86], %200 {strides = array<i32>} : memref<1x8x32xf32, #tpu.memory_space<vmem>>, vector<1x8x32xf32>,
    return
  }
  func.func @transform_0(%arg0: i32) -> (i32, i32, i32) {
    %c0_i32 = arith.constant 0 : i32
    %c0_i32_0 = arith.constant 0 : i32
    %c0_i32_1 = arith.constant 0 : i32
    return %arg0, %c0_i32, %c0_i32_0 : i32, i32, i32
  }
  func.func @transform_1(%arg0: i32) -> (i32, i32, i32, i32) {
    %c0_i32 = arith.constant 0 : i32
    %c0_i32_0 = arith.constant 0 : i32
    %c0_i32_1 = arith.constant 0 : i32
    %c0_i32_2 = arith.constant 0 : i32
    return %arg0, %c0_i32, %c0_i32_0, %c0_i32_1 : i32, i32, i32, i32
  }
  func.func @transform_2(%arg0: i32) -> (i32, i32) {
    %c0_i32 = arith.constant 0 : i32
    %c0_i32_0 = arith.constant 0 : i32
    %c0_i32_1 = arith.constant 0 : i32
    return %c0_i32, %c0_i32_0 : i32, i32
  }
  func.func @transform_3(%arg0: i32) -> (i32, i32) {
    %c0_i32 = arith.constant 0 : i32
    %c0_i32_0 = arith.constant 0 : i32
    %c0_i32_1 = arith.constant 0 : i32
    return %c0_i32, %c0_i32_0 : i32, i32
  }
  func.func @transform_4(%arg0: i32) -> (i32, i32) {
    %c0_i32 = arith.constant 0 : i32
    %c0_i32_0 = arith.constant 0 : i32
    %c0_i32_1 = arith.constant 0 : i32
    return %c0_i32, %c0_i32_0 : i32, i32
  }
  func.func @transform_5(%arg0: i32) -> (i32, i32) {
    %c0_i32 = arith.constant 0 : i32
    %c0_i32_0 = arith.constant 0 : i32
    %c0_i32_1 = arith.constant 0 : i32
    return %c0_i32, %c0_i32_0 : i32, i32
  }
  func.func @transform_6(%arg0: i32) -> (i32, i32) {
    %c0_i32 = arith.constant 0 : i32
    %c0_i32_0 = arith.constant 0 : i32
    %c0_i32_1 = arith.constant 0 : i32
    return %c0_i32, %c0_i32_0 : i32, i32
  }
  func.func @transform_7(%arg0: i32) -> (i32, i32) {
    %c0_i32 = arith.constant 0 : i32
    %c0_i32_0 = arith.constant 0 : i32
    %c0_i32_1 = arith.constant 0 : i32
    return %c0_i32, %c0_i32_0 : i32, i32
  }
  func.func @transform_8(%arg0: i32) -> (i32, i32) {
    %c0_i32 = arith.constant 0 : i32
    %c0_i32_0 = arith.constant 0 : i32
    %c0_i32_1 = arith.constant 0 : i32
    return %c0_i32, %c0_i32_0 : i32, i32
  }
  func.func @transform_9(%arg0: i32) -> (i32, i32) {
    %c0_i32 = arith.constant 0 : i32
    %c0_i32_0 = arith.constant 0 : i32
    %c0_i32_1 = arith.constant 0 : i32
    return %c0_i32, %c0_i32_0 : i32, i32
  }
  func.func @transform_10(%arg0: i32) -> (i32, i32) {
    %c0_i32 = arith.constant 0 : i32
    %c0_i32_0 = arith.constant 0 : i32
    %c0_i32_1 = arith.constant 0 : i32
    return %c0_i32, %c0_i32_0 : i32, i32
  }
  func.func @transform_11(%arg0: i32) -> (i32, i32) {
    %c0_i32 = arith.constant 0 : i32
    %c0_i32_0 = arith.constant 0 : i32
    %c0_i32_1 = arith.constant 0 : i32
    return %c0_i32, %c0_i32_0 : i32, i32
  }
  func.func @transform_12(%arg0: i32) -> (i32, i32) {
    %c0_i32 = arith.constant 0 : i32
    %c0_i32_0 = arith.constant 0 : i32
    %c0_i32_1 = arith.constant 0 : i32
    return %c0_i32, %c0_i32_0 : i32, i32
  }
  func.func @transform_13(%arg0: i32) -> (i32, i32) {
    %c0_i32 = arith.constant 0 : i32
    %c0_i32_0 = arith.constant 0 : i32
    %c0_i32_1 = arith.constant 0 : i32
    return %c0_i32, %c0_i32_0 : i32, i32
  }
  func.func @transform_14(%arg0: i32) -> (i32, i32, i32) {
    %c0_i32 = arith.constant 0 : i32
    %c0_i32_0 = arith.constant 0 : i32
    %c0_i32_1 = arith.constant 0 : i32
    return %arg0, %c0_i32, %c0_i32_0 : i32, i32, i32
  }
  func.func @transform_15(%arg0: i32) -> (i32, i32, i32, i32) {
    %c0_i32 = arith.constant 0 : i32
    %c0_i32_0 = arith.constant 0 : i32
    %c0_i32_1 = arith.constant 0 : i32
    %c0_i32_2 = arith.constant 0 : i32
    return %arg0, %c0_i32, %c0_i32_0, %c0_i32_1 : i32, i32, i32, i32
  }
}

</mosaic_0001>

<llo_original>
// kernel: tpu_custom_call.1
$region0: #{tpu_custom_call.1}
  #allocation0 [shape = 'u32[]', space=smem, size = 0x4, offset = 0x4, fixed_abs, tag = 'smem constant byte address 0x4 - core index']
  #allocation1 [shape = 'u32[144,128]{1,0:T(1,128)}', space=vmem, size = 0x12000, scoped, tag = 'internal scratch']
  #allocation2 [shape = 'bf16[8,32]{1,0:T(8,128)(2,1)}', space=vmem, size = 0x800, scoped, tag = 'scratch operand']
  %s0 = inlined_call_operand.vmem [shape: f32[2,8,32], index: 0, kind: input, shape index: {}]
  %s1 = inlined_call_operand.hbm [shape: s8[2,1,8,8], index: 1, kind: input, shape index: {}]
  %s2 = inlined_call_operand.vmem [shape: f32[1,32], index: 2, kind: input, shape index: {}]
  %s3 = inlined_call_operand.vmem [shape: f32[1,32], index: 3, kind: input, shape index: {}]
  %s4 = inlined_call_operand.vmem [shape: bf16[32,96], index: 4, kind: input, shape index: {}]
  %s5 = inlined_call_operand.hbm [shape: f32[1,96], index: 5, kind: input, shape index: {}]
  %s6 = inlined_call_operand.vmem [shape: bf16[32,32], index: 6, kind: input, shape index: {}]
  %s7 = inlined_call_operand.hbm [shape: f32[1,32], index: 7, kind: input, shape index: {}]
  %s8 = inlined_call_operand.hbm [shape: f32[1,32], index: 8, kind: input, shape index: {}]
  %s9 = inlined_call_operand.hbm [shape: f32[1,32], index: 9, kind: input, shape index: {}]
  %s10 = inlined_call_operand.vmem [shape: bf16[32,64], index: 10, kind: input, shape index: {}]
  %s11 = inlined_call_operand.vmem [shape: f32[1,64], index: 11, kind: input, shape index: {}]
  %s12 = inlined_call_operand.vmem [shape: bf16[64,32], index: 12, kind: input, shape index: {}]
  %s13 = inlined_call_operand.vmem [shape: f32[1,32], index: 13, kind: input, shape index: {}]
  %s14 = inlined_call_operand.hbm [shape: f32[2,8,32], index: 14, kind: output, shape index: {0}]
  %s15 = inlined_call_operand.hbm [shape: f32[2,4,8,8], index: 15, kind: output, shape index: {1}]
  %16 = xla_tuple %s14, %s15
  %s17 = sld [smem:[#allocation0]]
  $region117: #{tpu_custom_call.1} parent=0
    _
  %s19 = ssub.s32 1, %s17
  %s20 = scalar_select 0, %s19, %s17
  $region1: #{tpu_custom_call.1} parent=0
    #allocation3 [shape = 'u8[2048]{0}', space=vmem, size = 0x800, scoped, tag = 'input window, operand 1']
    #allocation4 [shape = 's32[2]{0}', space=sflag, size = 0x8, scoped, tag = 'scoped memory for tpu_custom_call.1']
    #allocation5 [shape = 's32[2]{0}', space=sflag, size = 0x8, scoped, tag = 'scoped memory for tpu_custom_call.1']
    #allocation6 [shape = 'u8[512]{0}', space=vmem, size = 0x400, scoped, tag = 'input window, operand 5, single buffered']
    #allocation7 [shape = 's32[1]{0}', space=sflag, size = 0x4, scoped, tag = 'scoped memory for tpu_custom_call.1']
    #allocation8 [shape = 'u8[512]{0}', space=vmem, size = 0x400, scoped, tag = 'input window, operand 7, single buffered']
    #allocation9 [shape = 'u8[512]{0}', space=vmem, size = 0x400, scoped, tag = 'input window, operand 8, single buffered']
    #allocation10 [shape = 's32[1]{0}', space=sflag, size = 0x4, scoped, tag = 'scoped memory for tpu_custom_call.1']
    #allocation11 [shape = 'u8[512]{0}', space=vmem, size = 0x400, scoped, tag = 'input window, operand 9, single buffered']
    #allocation12 [shape = 'u8[8192]{0}', space=vmem, size = 0x2000, scoped, tag = 'output window, operand 0']
    #allocation13 [shape = 'u8[32768]{0}', space=vmem, size = 0x8000, scoped, tag = 'output window, operand 1']
    #allocation14 [shape = 's32[2]{0}', space=sflag, size = 0x8, scoped, tag = 'scoped memory for tpu_custom_call.1']
    %21 = vsyncpa [#allocation4], 0
    %s22 = scalar_lea.sflag [#allocation4], 1
    %23 = vsyncpa %s22, 0
    %24 = vsyncpa [#allocation7], 0
    %25 = vsyncpa [#allocation10], 0
    %26 = vsyncpa [#allocation5], 0
    %s27 = scalar_lea.sflag [#allocation5], 1
    %28 = vsyncpa %s27, 0
    %29 = vsyncpa [#allocation14], 0
    %s30 = scalar_lea.sflag [#allocation14], 1
    %31 = vsyncpa %s30, 0
    loop: start=0, step=1, limit=4
    $region2: #{tpu_custom_call.1} parent=1 // loop_pre_header
      _
    $region3: #{tpu_custom_call.1} parent=1 // loop_header
      %s33 = sphi 0, %s37
      %p34 = scmp.ge.s32.totalorder %s33, 4
      %s43 = sphi 0, %s45
      %s46 = sphi 0, %s43
      %s47 = sphi 0, %s46
      %s63 = sphi 0, %s47
      %s69 = sphi 0, %s71
      %s72 = sphi 0, %s69
      %s73 = sphi 0, %s72
      %s89 = sphi 0, %s73
      %s93 = sphi 0, %s93
      %s95 = sphi 0, %s93
      %s96 = sphi 0, %s95
      %s110 = sphi 0, %s96
      %s114 = sphi 0, %s114
      %s116 = sphi 0, %s114
      %s117 = sphi 0, %s116
      %s131 = sphi 0, %s117
      %s135 = sphi 0, %s135
      %s137 = sphi 0, %s135
      %s138 = sphi 0, %s137
      %s152 = sphi 0, %s138
      %s156 = sphi 0, %s156
      %s158 = sphi 0, %s156
      %s159 = sphi 0, %s158
      %s173 = sphi 0, %s159
      %s177 = sphi 0, %s177
      %s179 = sphi 0, %s177
      %s180 = sphi 0, %s179
      %s194 = sphi 0, %s180
      %s198 = sphi 0, %s198
      %s200 = sphi 0, %s198
      %s201 = sphi 0, %s200
      %s215 = sphi 0, %s201
      %s219 = sphi 0, %s219
      %s221 = sphi 0, %s219
      %s222 = sphi 0, %s221
      %s236 = sphi 0, %s222
      %s240 = sphi 0, %s240
      %s242 = sphi 0, %s240
      %s243 = sphi 0, %s242
      %s257 = sphi 0, %s243
      %s261 = sphi 0, %s261
      %s263 = sphi 0, %s261
      %s264 = sphi 0, %s263
      %s278 = sphi 0, %s264
      %s282 = sphi 0, %s282
      %s284 = sphi 0, %s282
      %s285 = sphi 0, %s284
      %s299 = sphi 0, %s285
      %s303 = sphi 0, %s303
      %s305 = sphi 0, %s303
      %s306 = sphi 0, %s305
      %s320 = sphi 0, %s306
      %s324 = sphi 0, %s324
      %s326 = sphi 0, %s324
      %s327 = sphi 0, %s326
      %s341 = sphi 0, %s327
      %s347 = sphi 0, %s349
      %s350 = sphi 0, %s347
      %s351 = sphi 0, %s350
      %s367 = sphi 0, %s351
      %s373 = sphi 0, %s375
      %s376 = sphi 0, %s373
      %s377 = sphi 0, %s376
      %s393 = sphi 0, %s377
    $region4: #{tpu_custom_call.1} parent=1 // loop_header_branch
      %36 = sbr.rel (%p34) target = $region8
    $region5: #{tpu_custom_call.1} parent=1 // loop_body
      %s38 = ssub.s32 %s33, 1
      %s39 = ssub.s32 %s33, 2
      %s40 = sadd.s32 %s33, 1
      %s41 = ssub.s32 %s33, %s40
      %p42 = scmp.eq.s32.totalorder %s41, 0
      %s44 = sadd.s32 %s43, 1
      %s45 = scalar_select %p42, %s43, %s44
      %p48 = pneg %p42
      %p49 = scmp.eq.s32.totalorder %s33, 1
      %p50 = por %p48, %p49
      %p51 = scmp.ne.s32.totalorder %s43, %s46
      %p52 = scmp.eq.s32.totalorder %s33, 0
      %p53 = por %p51, %p52
      %p54 = scmp.ne.s32.totalorder %s43, %s46
      %p55 = scmp.eq.s32.totalorder %s38, 1
      %p56 = por %p54, %p55
      %p57 = scmp.ne.s32.totalorder %s46, %s47
      %p58 = scmp.eq.s32.totalorder %s38, 0
      %p59 = por %p57, %p58
      %p60 = scmp.ne.s32.totalorder %s46, %s47
      %p61 = scmp.eq.s32.totalorder %s39, 1
      %p62 = por %p60, %p61
      %p64 = scmp.ne.s32.totalorder %s47, %s63
      %p65 = scmp.eq.s32.totalorder %s39, 0
      %p66 = por %p64, %p65
      %s67 = ssub.s32 %s33, %s40
      %p68 = scmp.eq.s32.totalorder %s67, 0
      %s70 = sadd.s32 %s69, 1
      %s71 = scalar_select %p68, %s69, %s70
      %p74 = pneg %p68
      %p75 = scmp.eq.s32.totalorder %s33, 1
      %p76 = por %p74, %p75
      %p77 = scmp.ne.s32.totalorder %s69, %s72
      %p78 = scmp.eq.s32.totalorder %s33, 0
      %p79 = por %p77, %p78
      %p80 = scmp.ne.s32.totalorder %s69, %s72
      %p81 = scmp.eq.s32.totalorder %s38, 1
      %p82 = por %p80, %p81
      %p83 = scmp.ne.s32.totalorder %s72, %s73
      %p84 = scmp.eq.s32.totalorder %s38, 0
      %p85 = por %p83, %p84
      %p86 = scmp.ne.s32.totalorder %s72, %s73
      %p87 = scmp.eq.s32.totalorder %s39, 1
      %p88 = por %p86, %p87
      %p90 = scmp.ne.s32.totalorder %s73, %s89
      %p91 = scmp.eq.s32.totalorder %s39, 0
      %p92 = por %p90, %p91
      %s94 = sadd.s32 %s93, 1
      %p97 = scmp.eq.s32.totalorder %s33, 1
      %p98 = scmp.ne.s32.totalorder %s93, %s95
      %p99 = scmp.eq.s32.totalorder %s33, 0
      %p100 = por %p98, %p99
      %p101 = scmp.ne.s32.totalorder %s93, %s95
      %p102 = scmp.eq.s32.totalorder %s38, 1
      %p103 = por %p101, %p102
      %p104 = scmp.ne.s32.totalorder %s95, %s96
      %p105 = scmp.eq.s32.totalorder %s38, 0
      %p106 = por %p104, %p105
      %p107 = scmp.ne.s32.totalorder %s95, %s96
      %p108 = scmp.eq.s32.totalorder %s39, 1
      %p109 = por %p107, %p108
      %p111 = scmp.ne.s32.totalorder %s96, %s110
      %p112 = scmp.eq.s32.totalorder %s39, 0
      %p113 = por %p111, %p112
      %s115 = sadd.s32 %s114, 1
      %p118 = scmp.eq.s32.totalorder %s33, 1
      %p119 = scmp.ne.s32.totalorder %s114, %s116
      %p120 = scmp.eq.s32.totalorder %s33, 0
      %p121 = por %p119, %p120
      %p122 = scmp.ne.s32.totalorder %s114, %s116
      %p123 = scmp.eq.s32.totalorder %s38, 1
      %p124 = por %p122, %p123
      %p125 = scmp.ne.s32.totalorder %s116, %s117
      %p126 = scmp.eq.s32.totalorder %s38, 0
      %p127 = por %p125, %p126
      %p128 = scmp.ne.s32.totalorder %s116, %s117
      %p129 = scmp.eq.s32.totalorder %s39, 1
      %p130 = por %p128, %p129
      %p132 = scmp.ne.s32.totalorder %s117, %s131
      %p133 = scmp.eq.s32.totalorder %s39, 0
      %p134 = por %p132, %p133
      %s136 = sadd.s32 %s135, 1
      %p139 = scmp.eq.s32.totalorder %s33, 1
      %p140 = scmp.ne.s32.totalorder %s135, %s137
      %p141 = scmp.eq.s32.totalorder %s33, 0
      %p142 = por %p140, %p141
      %p143 = scmp.ne.s32.totalorder %s135, %s137
      %p144 = scmp.eq.s32.totalorder %s38, 1
      %p145 = por %p143, %p144
      %p146 = scmp.ne.s32.totalorder %s137, %s138
      %p147 = scmp.eq.s32.totalorder %s38, 0
      %p148 = por %p146, %p147
      %p149 = scmp.ne.s32.totalorder %s137, %s138
      %p150 = scmp.eq.s32.totalorder %s39, 1
      %p151 = por %p149, %p150
      %p153 = scmp.ne.s32.totalorder %s138, %s152
      %p154 = scmp.eq.s32.totalorder %s39, 0
      %p155 = por %p153, %p154
      %s157 = sadd.s32 %s156, 1
      %p160 = scmp.eq.s32.totalorder %s33, 1
      %p161 = scmp.ne.s32.totalorder %s156, %s158
      %p162 = scmp.eq.s32.totalorder %s33, 0
      %p163 = por %p161, %p162
      %p164 = scmp.ne.s32.totalorder %s156, %s158
      %p165 = scmp.eq.s32.totalorder %s38, 1
      %p166 = por %p164, %p165
      %p167 = scmp.ne.s32.totalorder %s158, %s159
      %p168 = scmp.eq.s32.totalorder %s38, 0
      %p169 = por %p167, %p168
      %p170 = scmp.ne.s32.totalorder %s158, %s159
      %p171 = scmp.eq.s32.totalorder %s39, 1
      %p172 = por %p170, %p171
      %p174 = scmp.ne.s32.totalorder %s159, %s173
      %p175 = scmp.eq.s32.totalorder %s39, 0
      %p176 = por %p174, %p175
      %s178 = sadd.s32 %s177, 1
      %p181 = scmp.eq.s32.totalorder %s33, 1
      %p182 = scmp.ne.s32.totalorder %s177, %s179
      %p183 = scmp.eq.s32.totalorder %s33, 0
      %p184 = por %p182, %p183
      %p185 = scmp.ne.s32.totalorder %s177, %s179
      %p186 = scmp.eq.s32.totalorder %s38, 1
      %p187 = por %p185, %p186
      %p188 = scmp.ne.s32.totalorder %s179, %s180
      %p189 = scmp.eq.s32.totalorder %s38, 0
      %p190 = por %p188, %p189
      %p191 = scmp.ne.s32.totalorder %s179, %s180
      %p192 = scmp.eq.s32.totalorder %s39, 1
      %p193 = por %p191, %p192
      %p195 = scmp.ne.s32.totalorder %s180, %s194
      %p196 = scmp.eq.s32.totalorder %s39, 0
      %p197 = por %p195, %p196
      %s199 = sadd.s32 %s198, 1
      %p202 = scmp.eq.s32.totalorder %s33, 1
      %p203 = scmp.ne.s32.totalorder %s198, %s200
      %p204 = scmp.eq.s32.totalorder %s33, 0
      %p205 = por %p203, %p204
      %p206 = scmp.ne.s32.totalorder %s198, %s200
      %p207 = scmp.eq.s32.totalorder %s38, 1
      %p208 = por %p206, %p207
      %p209 = scmp.ne.s32.totalorder %s200, %s201
      %p210 = scmp.eq.s32.totalorder %s38, 0
      %p211 = por %p209, %p210
      %p212 = scmp.ne.s32.totalorder %s200, %s201
      %p213 = scmp.eq.s32.totalorder %s39, 1
      %p214 = por %p212, %p213
      %p216 = scmp.ne.s32.totalorder %s201, %s215
      %p217 = scmp.eq.s32.totalorder %s39, 0
      %p218 = por %p216, %p217
      %s220 = sadd.s32 %s219, 1
      %p223 = scmp.eq.s32.totalorder %s33, 1
      %p224 = scmp.ne.s32.totalorder %s219, %s221
      %p225 = scmp.eq.s32.totalorder %s33, 0
      %p226 = por %p224, %p225
      %p227 = scmp.ne.s32.totalorder %s219, %s221
      %p228 = scmp.eq.s32.totalorder %s38, 1
      %p229 = por %p227, %p228
      %p230 = scmp.ne.s32.totalorder %s221, %s222
      %p231 = scmp.eq.s32.totalorder %s38, 0
      %p232 = por %p230, %p231
      %p233 = scmp.ne.s32.totalorder %s221, %s222
      %p234 = scmp.eq.s32.totalorder %s39, 1
      %p235 = por %p233, %p234
      %p237 = scmp.ne.s32.totalorder %s222, %s236
      %p238 = scmp.eq.s32.totalorder %s39, 0
      %p239 = por %p237, %p238
      %s241 = sadd.s32 %s240, 1
      %p244 = scmp.eq.s32.totalorder %s33, 1
      %p245 = scmp.ne.s32.totalorder %s240, %s242
      %p246 = scmp.eq.s32.totalorder %s33, 0
      %p247 = por %p245, %p246
      %p248 = scmp.ne.s32.totalorder %s240, %s242
      %p249 = scmp.eq.s32.totalorder %s38, 1
      %p250 = por %p248, %p249
      %p251 = scmp.ne.s32.totalorder %s242, %s243
      %p252 = scmp.eq.s32.totalorder %s38, 0
      %p253 = por %p251, %p252
      %p254 = scmp.ne.s32.totalorder %s242, %s243
      %p255 = scmp.eq.s32.totalorder %s39, 1
      %p256 = por %p254, %p255
      %p258 = scmp.ne.s32.totalorder %s243, %s257
      %p259 = scmp.eq.s32.totalorder %s39, 0
      %p260 = por %p258, %p259
      %s262 = sadd.s32 %s261, 1
      %p265 = scmp.eq.s32.totalorder %s33, 1
      %p266 = scmp.ne.s32.totalorder %s261, %s263
      %p267 = scmp.eq.s32.totalorder %s33, 0
      %p268 = por %p266, %p267
      %p269 = scmp.ne.s32.totalorder %s261, %s263
      %p270 = scmp.eq.s32.totalorder %s38, 1
      %p271 = por %p269, %p270
      %p272 = scmp.ne.s32.totalorder %s263, %s264
      %p273 = scmp.eq.s32.totalorder %s38, 0
      %p274 = por %p272, %p273
      %p275 = scmp.ne.s32.totalorder %s263, %s264
      %p276 = scmp.eq.s32.totalorder %s39, 1
      %p277 = por %p275, %p276
      %p279 = scmp.ne.s32.totalorder %s264, %s278
      %p280 = scmp.eq.s32.totalorder %s39, 0
      %p281 = por %p279, %p280
      %s283 = sadd.s32 %s282, 1
      %p286 = scmp.eq.s32.totalorder %s33, 1
      %p287 = scmp.ne.s32.totalorder %s282, %s284
      %p288 = scmp.eq.s32.totalorder %s33, 0
      %p289 = por %p287, %p288
      %p290 = scmp.ne.s32.totalorder %s282, %s284
      %p291 = scmp.eq.s32.totalorder %s38, 1
      %p292 = por %p290, %p291
      %p293 = scmp.ne.s32.totalorder %s284, %s285
      %p294 = scmp.eq.s32.totalorder %s38, 0
      %p295 = por %p293, %p294
      %p296 = scmp.ne.s32.totalorder %s284, %s285
      %p297 = scmp.eq.s32.totalorder %s39, 1
      %p298 = por %p296, %p297
      %p300 = scmp.ne.s32.totalorder %s285, %s299
      %p301 = scmp.eq.s32.totalorder %s39, 0
      %p302 = por %p300, %p301
      %s304 = sadd.s32 %s303, 1
      %p307 = scmp.eq.s32.totalorder %s33, 1
      %p308 = scmp.ne.s32.totalorder %s303, %s305
      %p309 = scmp.eq.s32.totalorder %s33, 0
      %p310 = por %p308, %p309
      %p311 = scmp.ne.s32.totalorder %s303, %s305
      %p312 = scmp.eq.s32.totalorder %s38, 1
      %p313 = por %p311, %p312
      %p314 = scmp.ne.s32.totalorder %s305, %s306
      %p315 = scmp.eq.s32.totalorder %s38, 0
      %p316 = por %p314, %p315
      %p317 = scmp.ne.s32.totalorder %s305, %s306
      %p318 = scmp.eq.s32.totalorder %s39, 1
      %p319 = por %p317, %p318
      %p321 = scmp.ne.s32.totalorder %s306, %s320
      %p322 = scmp.eq.s32.totalorder %s39, 0
      %p323 = por %p321, %p322
      %s325 = sadd.s32 %s324, 1
      %p328 = scmp.eq.s32.totalorder %s33, 1
      %p329 = scmp.ne.s32.totalorder %s324, %s326
      %p330 = scmp.eq.s32.totalorder %s33, 0
      %p331 = por %p329, %p330
      %p332 = scmp.ne.s32.totalorder %s324, %s326
      %p333 = scmp.eq.s32.totalorder %s38, 1
      %p334 = por %p332, %p333
      %p335 = scmp.ne.s32.totalorder %s326, %s327
      %p336 = scmp.eq.s32.totalorder %s38, 0
      %p337 = por %p335, %p336
      %p338 = scmp.ne.s32.totalorder %s326, %s327
      %p339 = scmp.eq.s32.totalorder %s39, 1
      %p340 = por %p338, %p339
      %p342 = scmp.ne.s32.totalorder %s327, %s341
      %p343 = scmp.eq.s32.totalorder %s39, 0
      %p344 = por %p342, %p343
      %s345 = ssub.s32 %s33, %s40
      %p346 = scmp.eq.s32.totalorder %s345, 0
      %s348 = sadd.s32 %s347, 1
      %s349 = scalar_select %p346, %s347, %s348
      %p352 = pneg %p346
      %p353 = scmp.eq.s32.totalorder %s33, 1
      %p354 = por %p352, %p353
      %p355 = scmp.ne.s32.totalorder %s347, %s350
      %p356 = scmp.eq.s32.totalorder %s33, 0
      %p357 = por %p355, %p356
      %p358 = scmp.ne.s32.totalorder %s347, %s350
      %p359 = scmp.eq.s32.totalorder %s38, 1
      %p360 = por %p358, %p359
      %p361 = scmp.ne.s32.totalorder %s350, %s351
      %p362 = scmp.eq.s32.totalorder %s38, 0
      %p363 = por %p361, %p362
      %p364 = scmp.ne.s32.totalorder %s350, %s351
      %p365 = scmp.eq.s32.totalorder %s39, 1
      %p366 = por %p364, %p365
      %p368 = scmp.ne.s32.totalorder %s351, %s367
      %p369 = scmp.eq.s32.totalorder %s39, 0
      %p370 = por %p368, %p369
      %s371 = ssub.s32 %s33, %s40
      %p372 = scmp.eq.s32.totalorder %s371, 0
      %s374 = sadd.s32 %s373, 1
      %s375 = scalar_select %p372, %s373, %s374
      %p378 = pneg %p372
      %p379 = scmp.eq.s32.totalorder %s33, 1
      %p380 = por %p378, %p379
      %p381 = scmp.ne.s32.totalorder %s373, %s376
      %p382 = scmp.eq.s32.totalorder %s33, 0
      %p383 = por %p381, %p382
      %p384 = scmp.ne.s32.totalorder %s373, %s376
      %p385 = scmp.eq.s32.totalorder %s38, 1
      %p386 = por %p384, %p385
      %p387 = scmp.ne.s32.totalorder %s376, %s377
      %p388 = scmp.eq.s32.totalorder %s38, 0
      %p389 = por %p387, %p388
      %p390 = scmp.ne.s32.totalorder %s376, %s377
      %p391 = scmp.eq.s32.totalorder %s39, 1
      %p392 = por %p390, %p391
      %p394 = scmp.ne.s32.totalorder %s377, %s393
      %p395 = scmp.eq.s32.totalorder %s39, 0
      %p396 = por %p394, %p395
      %p397 = scmp.le.s32.totalorder 1, %s33
      %p398 = scmp.lt.s32.totalorder %s33, 3
      %p399 = pnand %p397, %p398
      %p400 = pneg %p399
      // Predicated region
      $region9: #{tpu_custom_call.1} parent=5 // pred_check
        _
      $region10: #{tpu_custom_call.1} parent=5 // pred_check_branch
        %402 = sbr.rel (%p399) target = $region12
      $region11: #{tpu_custom_call.1} parent=5 // pred_region
        %s403 = ssub.s32 %s33, 1
        // Predicated region
        $region13: #{tpu_custom_call.1} parent=11 // pred_check
          %p404 = pneg %p106
        $region14: #{tpu_custom_call.1} parent=11 // pred_check_branch
          %406 = sbr.rel (%p404) target = $region16
        $region15: #{tpu_custom_call.1} parent=11 // pred_region
          _
        $region16: #{tpu_custom_call.1} parent=11 // pred_fallthru
          _
        // Predicated region
        $region17: #{tpu_custom_call.1} parent=11 // pred_check
          %p407 = pneg %p127
        $region18: #{tpu_custom_call.1} parent=11 // pred_check_branch
          %409 = sbr.rel (%p407) target = $region20
        $region19: #{tpu_custom_call.1} parent=11 // pred_region
          _
        $region20: #{tpu_custom_call.1} parent=11 // pred_fallthru
          _
        // Predicated region
        $region21: #{tpu_custom_call.1} parent=11 // pred_check
          %p410 = pneg %p148
        $region22: #{tpu_custom_call.1} parent=11 // pred_check_branch
          %412 = sbr.rel (%p410) target = $region24
        $region23: #{tpu_custom_call.1} parent=11 // pred_region
          _
        $region24: #{tpu_custom_call.1} parent=11 // pred_fallthru
          _
        // Predicated region
        $region25: #{tpu_custom_call.1} parent=11 // pred_check
          %p413 = pneg %p169
        $region26: #{tpu_custom_call.1} parent=11 // pred_check_branch
          %415 = sbr.rel (%p413) target = $region28
        $region27: #{tpu_custom_call.1} parent=11 // pred_region
          %s417 = ssub.s32 16, 16
          %418 = vsyncadd [#allocation7], %s417
          %s420 = sshll.u32 [#allocation6], 4
          %s421 = int_to_ptr.vmem [resolvable:$true] %s420
          %423 = dma.hbm_to_vmem [thread:$0]  %s5, 16, %s421, [#allocation7]
        $region28: #{tpu_custom_call.1} parent=11 // pred_fallthru
          _
        // Predicated region
        $region29: #{tpu_custom_call.1} parent=11 // pred_check
          %p424 = pneg %p190
        $region30: #{tpu_custom_call.1} parent=11 // pred_check_branch
          %426 = sbr.rel (%p424) target = $region32
        $region31: #{tpu_custom_call.1} parent=11 // pred_region
          _
        $region32: #{tpu_custom_call.1} parent=11 // pred_fallthru
          _
        // Predicated region
        $region33: #{tpu_custom_call.1} parent=11 // pred_check
          %p427 = pneg %p211
        $region34: #{tpu_custom_call.1} parent=11 // pred_check_branch
          %429 = sbr.rel (%p427) target = $region36
        $region35: #{tpu_custom_call.1} parent=11 // pred_region
          %s431 = ssub.s32 16, 16
          %432 = vsyncadd [#allocation7], %s431
          %s434 = sshll.u32 [#allocation8], 4
          %s435 = int_to_ptr.vmem [resolvable:$true] %s434
          %437 = dma.hbm_to_vmem [thread:$0]  %s7, 16, %s435, [#allocation7]
        $region36: #{tpu_custom_call.1} parent=11 // pred_fallthru
          _
        // Predicated region
        $region37: #{tpu_custom_call.1} parent=11 // pred_check
          %p438 = pneg %p232
        $region38: #{tpu_custom_call.1} parent=11 // pred_check_branch
          %440 = sbr.rel (%p438) target = $region40
        $region39: #{tpu_custom_call.1} parent=11 // pred_region
          %s442 = ssub.s32 16, 16
          %443 = vsyncadd [#allocation10], %s442
          %s445 = sshll.u32 [#allocation9], 4
          %s446 = int_to_ptr.vmem [resolvable:$true] %s445
          %448 = dma.hbm_to_vmem [thread:$0]  %s8, 16, %s446, [#allocation10]
        $region40: #{tpu_custom_call.1} parent=11 // pred_fallthru
          _
        // Predicated region
        $region41: #{tpu_custom_call.1} parent=11 // pred_check
          %p449 = pneg %p253
        $region42: #{tpu_custom_call.1} parent=11 // pred_check_branch
          %451 = sbr.rel (%p449) target = $region44
        $region43: #{tpu_custom_call.1} parent=11 // pred_region
          %s453 = ssub.s32 16, 16
          %454 = vsyncadd [#allocation10], %s453
          %s456 = sshll.u32 [#allocation11], 4
          %s457 = int_to_ptr.vmem [resolvable:$true] %s456
          %459 = dma.hbm_to_vmem [thread:$0]  %s9, 16, %s457, [#allocation10]
        $region44: #{tpu_custom_call.1} parent=11 // pred_fallthru
          _
        // Predicated region
        $region45: #{tpu_custom_call.1} parent=11 // pred_check
          %p460 = pneg %p274
        $region46: #{tpu_custom_call.1} parent=11 // pred_check_branch
          %462 = sbr.rel (%p460) target = $region48
        $region47: #{tpu_custom_call.1} parent=11 // pred_region
          _
        $region48: #{tpu_custom_call.1} parent=11 // pred_fallthru
          _
        // Predicated region
        $region49: #{tpu_custom_call.1} parent=11 // pred_check
          %p463 = pneg %p295
        $region50: #{tpu_custom_call.1} parent=11 // pred_check_branch
          %465 = sbr.rel (%p463) target = $region52
        $region51: #{tpu_custom_call.1} parent=11 // pred_region
          _
        $region52: #{tpu_custom_call.1} parent=11 // pred_fallthru
          _
        // Predicated region
        $region53: #{tpu_custom_call.1} parent=11 // pred_check
          %p466 = pneg %p316
        $region54: #{tpu_custom_call.1} parent=11 // pred_check_branch
          %468 = sbr.rel (%p466) target = $region56
        $region55: #{tpu_custom_call.1} parent=11 // pred_region
          _
        $region56: #{tpu_custom_call.1} parent=11 // pred_fallthru
          _
        // Predicated region
        $region57: #{tpu_custom_call.1} parent=11 // pred_check
          %p469 = pneg %p337
        $region58: #{tpu_custom_call.1} parent=11 // pred_check_branch
          %471 = sbr.rel (%p469) target = $region60
        $region59: #{tpu_custom_call.1} parent=11 // pred_region
          _
        $region60: #{tpu_custom_call.1} parent=11 // pred_fallthru
          _
      $region12: #{tpu_custom_call.1} parent=5 // pred_fallthru
        _
      %p472 = scmp.lt.s32.totalorder %s33, 2
      // Predicated region
      $region61: #{tpu_custom_call.1} parent=5 // pred_check
        %p473 = pneg %p472
      $region62: #{tpu_custom_call.1} parent=5 // pred_check_branch
        %475 = sbr.rel (%p473) target = $region64
      $region63: #{tpu_custom_call.1} parent=5 // pred_region
        // Predicated region
        $region65: #{tpu_custom_call.1} parent=63 // pred_check
          %p476 = pneg %p53
        $region66: #{tpu_custom_call.1} parent=63 // pred_check_branch
          %478 = sbr.rel (%p476) target = $region68
        $region67: #{tpu_custom_call.1} parent=63 // pred_region
          %p479 = scmp.lt.s32.totalorder %s33, 1
          %s480 = scalar_select %p479, %s33, 1
          %s481 = smul.addr %s480, 8
          %s482 = scalar_lea.vmem %s0, %s481
        $region68: #{tpu_custom_call.1} parent=63 // pred_fallthru
          _
        // Predicated region
        $region69: #{tpu_custom_call.1} parent=63 // pred_check
          %p483 = pneg %p79
        $region70: #{tpu_custom_call.1} parent=63 // pred_check_branch
          %485 = sbr.rel (%p483) target = $region72
        $region71: #{tpu_custom_call.1} parent=63 // pred_region
          %s486 = sand.u32 %s69, 1
          %s487 = scalar_lea.sflag [#allocation4], %s486
          %s488 = sand.u32 %s69, 1
          %s489 = smul.addr %s488, 2
          %s490 = scalar_lea.vmem [#allocation3], %s489
          %s492 = ssub.s32 32, 32
          %493 = vsyncadd %s487, %s492
          %s494 = smul.addr %s33, 32
          %s495 = scalar_lea.hbm %s1, %s494
          %s497 = sshll.u32 %s490, 4
          %s498 = int_to_ptr.vmem [resolvable:$true] %s497
          %500 = dma.hbm_to_vmem [thread:$0]  %s495, 32, %s498, %s487
        $region72: #{tpu_custom_call.1} parent=63 // pred_fallthru
          _
      $region64: #{tpu_custom_call.1} parent=5 // pred_fallthru
        _
      %p501 = scmp.le.s32.totalorder 1, %s33
      %p502 = scmp.lt.s32.totalorder %s33, 3
      %p503 = pnand %p501, %p502
      %p504 = pneg %p503
      // Predicated region
      $region73: #{tpu_custom_call.1} parent=5 // pred_check
        _
      $region74: #{tpu_custom_call.1} parent=5 // pred_check_branch
        %506 = sbr.rel (%p503) target = $region76
      $region75: #{tpu_custom_call.1} parent=5 // pred_region
        %s507 = ssub.s32 %s33, 1
        %s508 = sand.u32 %s72, 1
        %s509 = scalar_lea.sflag [#allocation4], %s508
        %s510 = sand.u32 %s72, 1
        %s511 = smul.addr %s510, 2
        %s512 = scalar_lea.vmem [#allocation3], %s511
        // Predicated region
        $region77: #{tpu_custom_call.1} parent=75 // pred_check
          %p513 = pneg %p85
        $region78: #{tpu_custom_call.1} parent=75 // pred_check_branch
          %515 = sbr.rel (%p513) target = $region80
        $region79: #{tpu_custom_call.1} parent=75 // pred_region
          %516 = dma.done %s509, 32
        $region80: #{tpu_custom_call.1} parent=75 // pred_fallthru
          _
        // Predicated region
        $region81: #{tpu_custom_call.1} parent=75 // pred_check
          %p517 = pneg %p169
        $region82: #{tpu_custom_call.1} parent=75 // pred_check_branch
          %519 = sbr.rel (%p517) target = $region84
        $region83: #{tpu_custom_call.1} parent=75 // pred_region
          %520 = dma.done [#allocation7], 16
        $region84: #{tpu_custom_call.1} parent=75 // pred_fallthru
          _
        // Predicated region
        $region85: #{tpu_custom_call.1} parent=75 // pred_check
          %p521 = pneg %p211
        $region86: #{tpu_custom_call.1} parent=75 // pred_check_branch
          %523 = sbr.rel (%p521) target = $region88
        $region87: #{tpu_custom_call.1} parent=75 // pred_region
          %524 = dma.done [#allocation7], 16
        $region88: #{tpu_custom_call.1} parent=75 // pred_fallthru
          _
        // Predicated region
        $region89: #{tpu_custom_call.1} parent=75 // pred_check
          %p525 = pneg %p232
        $region90: #{tpu_custom_call.1} parent=75 // pred_check_branch
          %527 = sbr.rel (%p525) target = $region92
        $region91: #{tpu_custom_call.1} parent=75 // pred_region
          %528 = dma.done [#allocation10], 16
        $region92: #{tpu_custom_call.1} parent=75 // pred_fallthru
          _
        // Predicated region
        $region93: #{tpu_custom_call.1} parent=75 // pred_check
          %p529 = pneg %p253
        $region94: #{tpu_custom_call.1} parent=75 // pred_check_branch
          %531 = sbr.rel (%p529) target = $region96
        $region95: #{tpu_custom_call.1} parent=75 // pred_region
          %532 = dma.done [#allocation10], 16
        $region96: #{tpu_custom_call.1} parent=75 // pred_fallthru
          _
        %p533 = scmp.lt.s32.totalorder %s38, 1
        %s534 = scalar_select %p533, %s38, 1
        %s535 = smul.addr %s534, 8
        %s536 = scalar_lea.vmem %s0, %s535
        %p537 = pneg %p59
        %p538 = pneg %p56
        %s539 = sand.u32 %s72, 1
        %s540 = scalar_lea.sflag [#allocation4], %s539
        %s541 = sand.u32 %s72, 1
        %s542 = smul.addr %s541, 2
        %s543 = scalar_lea.vmem [#allocation3], %s542
        %p544 = pneg %p85
        %p545 = pneg %p82
        %p546 = pneg %p106
        %p547 = pneg %p103
        %p548 = pneg %p127
        %p549 = pneg %p124
        %p550 = pneg %p148
        %p551 = pneg %p145
        %p552 = pneg %p169
        %p553 = pneg %p166
        %p554 = pneg %p190
        %p555 = pneg %p187
        %p556 = pneg %p211
        %p557 = pneg %p208
        %p558 = pneg %p232
        %p559 = pneg %p229
        %p560 = pneg %p253
        %p561 = pneg %p250
        %p562 = pneg %p274
        %p563 = pneg %p271
        %p564 = pneg %p295
        %p565 = pneg %p292
        %p566 = pneg %p316
        %p567 = pneg %p313
        %p568 = pneg %p337
        %p569 = pneg %p334
        %p570 = pneg %p363
        %p571 = pneg %p360
        %s572 = sand.u32 %s350, 1
        %s573 = scalar_lea.sflag [#allocation5], %s572
        %s574 = sand.u32 %s350, 1
        %s575 = smul.addr %s574, 8
        %s576 = scalar_lea.vmem [#allocation12], %s575
        %p577 = pneg %p389
        %p578 = pneg %p386
        %s579 = sand.u32 %s376, 1
        %s580 = scalar_lea.sflag [#allocation14], %s579
        %s581 = sand.u32 %s376, 1
        %s582 = smul.addr %s581, 32
        %s583 = scalar_lea.vmem [#allocation13], %s582
        %p584 = scmp.lt.s32.totalorder %s38, 1
        %s585 = scalar_select %p584, %s38, 1
        %s586 = smul.addr %s585, 8
        %s587 = scalar_lea.vmem %s0, %s586
        %v589 = vld [vmem:[%s587] sm:$0xff]
        %v590 = vld [vmem:[%s2] sm:$0x1]
        %v591 = vld [vmem:[%s3] sm:$0x1]
        %vm592 = vcmask 261120
        %v593 = vsel %vm592, %v589, 0.0
        %594 = vadd.xlane.f32.xlu0 %v593
        %v595 = vpop.xlane.xlu0 %594
        %v596 = vrcp.pop 32.0
        %v597 = vmul.f32 %v595, %v596
        %v598 = vsub.f32 %v589, %v597
        %v599 = vmul.f32 %v598, %v598
        %v600 = vsel %vm592, %v599, 0.0
        %601 = vadd.xlane.f32.xlu0 %v600
        %v602 = vpop.xlane.xlu0 %601
        %v603 = vmul.f32 %v602, %v596
        %v604 = vadd.f32 %v603, 1e-05
        %v605 = vrsqrt.pop %v604
        %v606 = vmul.f32 %v598, %v605
        %v608 = vlaneseq
        %v609 = vshrl.u32 %v608, 7
        %v610 = vsub.s32 0, %v609
        %v611 = vrot.slane %v590, %v610
        %v613 = vmul.f32 %v606, %v611
        %v615 = vlaneseq
        %v616 = vshrl.u32 %v615, 7
        %v617 = vsub.s32 0, %v616
        %v618 = vrot.slane %v591, %v617
        %v620 = vadd.f32 %v613, %v618
        %v621 = vpack.c.bf16 %v620, %v620
        %v622 = vld [vmem:[%s4] sm:$0xf]
        %v623 = vld [vmem:[%s4 + $0x4] sm:$0xf]
        %v624 = vld [vmem:[%s4 + $0x8] sm:$0xf]
        %v625 = vld [vmem:[%s4 + $0xc] sm:$0xf]
        %v626 = vld [vmem:[#allocation6] sm:$0x1]
        %v628 = vlaneseq
        %v629 = vshrl.u32 %v628, 7
        %v630 = vsub.s32 0, %v629
        %v631 = vrot.slane %v626, %v630
        %v637 = vunpack.c.l.b16 %v622
        %v638 = vunpack.c.l.b16 %v623
        %v639 = vunpack.c.l.b16 %v624
        %v640 = vunpack.c.l.b16 %v625
        %v641 = vpack.c.b16 %v638, %v637
        %v642 = vpack.c.b16 %v640, %v639
        %v646 = vsel %vm592, %v621, 0
        %648 = vmatprep.subr.bf16.mxu0 0
        %649 = vmatpush1.bf16.msra.mxu0 %v641
        %650 = vmatprep.subr.bf16.mxu0 0
        %651 = vmatpush1.bf16.msra.mxu0 %v642
        %652 = vmatprep.subr.bf16.mxu0 0
        %653 = vmatpush1.bf16.msra.mxu0 0
        %654 = vmatprep.subr.bf16.mxu0 0
        %655 = vmatpush1.bf16.msra.mxu0 0
        %656 = vmatprep.subr.bf16.mxu0 0
        %657 = vmatpush1.bf16.msra.mxu0 0
        %658 = vmatprep.subr.bf16.mxu0 0
        %659 = vmatpush1.bf16.msra.mxu0 0
        %660 = vmatprep.subr.bf16.mxu0 0
        %661 = vmatpush1.bf16.msra.mxu0 0
        %662 = vmatprep.subr.bf16.mxu0 0
        %663 = vmatpush1.bf16.msra.mxu0 0
        %664 = vmatprep.subr.bf16.mxu0 0
        %665 = vmatpush1.bf16.msra.mxu0 0
        %666 = vmatprep.subr.bf16.mxu0 0
        %667 = vmatpush1.bf16.msra.mxu0 0
        %668 = vmatprep.subr.bf16.mxu0 0
        %669 = vmatpush1.bf16.msra.mxu0 0
        %670 = vmatprep.subr.bf16.mxu0 0
        %671 = vmatpush1.bf16.msra.mxu0 0
        %672 = vmatprep.subr.bf16.mxu0 0
        %673 = vmatpush1.bf16.msra.mxu0 0
        %674 = vmatprep.subr.bf16.mxu0 0
        %675 = vmatpush1.bf16.msra.mxu0 0
        %676 = vmatprep.subr.bf16.mxu0 0
        %677 = vmatpush1.bf16.msra.mxu0 0
        %678 = vmatprep.subr.bf16.mxu0 0
        %679 = vmatpush1.bf16.msra.mxu0 0
        %680 = vmatprep.mubr.bf16.mxu0 0
        %681 = vmatmul.mubr.bf16.gmra.mrb[0].mxu0 %v646
        %v682 = vpop.f32.mrb[0].mxu0
        %v683 = vadd.f32 %v631, %v682
        %v684 = vpop.f32.mrb[0].mxu0
        %v685 = vpop.f32.mrb[0].mxu0
        %v686 = vpop.f32.mrb[0].mxu0
        %687 = vdwg.mxu0
        %v688 = vmul.f32 %v683, 0.35355338
        %v689 = vpack.c.bf16 %v688, %v688
        %v690 = vpack.c.bf16 %v683, %v683
        %v691 = vld [vmem:[%s512] sm:$0x3]
        %v692 = vunpack.c.0.s8 %v691
        %v693 = vcvt.s32.f32 %v692
        %vm694 = vcmp.gt.f32.partialorder %v693, 0.0
        %v695 = vsel %vm694, 0.0, -1e+09
        %697 = vrot.lane.b32.xlu0 %v690, 96
        %v698 = vpop.permute.xlu0 %697
        %vm699 = vcmask 64512
        %v701 = vsel %vm699, %v689, 0
        %v704 = vsel %vm699, %v698, 0
        %706 = vmatprep.subr.bf16.mxu0 0
        %707 = vmatpush1.bf16.xpose.msra.mxu0 %v704
        %708 = vmatprep.subr.bf16.mxu0 0
        %709 = vmatpush1.bf16.xpose.msra.mxu0 0
        %710 = vmatprep.subr.bf16.mxu0 0
        %711 = vmatpush1.bf16.xpose.msra.mxu0 0
        %712 = vmatprep.subr.bf16.mxu0 0
        %713 = vmatpush1.bf16.xpose.msra.mxu0 0
        %714 = vmatprep.subr.bf16.mxu0 0
        %715 = vmatpush1.bf16.xpose.msra.mxu0 0
        %716 = vmatprep.subr.bf16.mxu0 0
        %717 = vmatpush1.bf16.xpose.msra.mxu0 0
        %718 = vmatprep.subr.bf16.mxu0 0
        %719 = vmatpush1.bf16.xpose.msra.mxu0 0
        %720 = vmatprep.subr.bf16.mxu0 0
        %721 = vmatpush1.bf16.xpose.msra.mxu0 0
        %722 = vmatprep.subr.bf16.mxu0 0
        %723 = vmatpush1.bf16.xpose.msra.mxu0 0
        %724 = vmatprep.subr.bf16.mxu0 0
        %725 = vmatpush1.bf16.xpose.msra.mxu0 0
        %726 = vmatprep.subr.bf16.mxu0 0
        %727 = vmatpush1.bf16.xpose.msra.mxu0 0
        %728 = vmatprep.subr.bf16.mxu0 0
        %729 = vmatpush1.bf16.xpose.msra.mxu0 0
        %730 = vmatprep.subr.bf16.mxu0 0
        %731 = vmatpush1.bf16.xpose.msra.mxu0 0
        %732 = vmatprep.subr.bf16.mxu0 0
        %733 = vmatpush1.bf16.xpose.msra.mxu0 0
        %734 = vmatprep.subr.bf16.mxu0 0
        %735 = vmatpush1.bf16.xpose.msra.mxu0 0
        %736 = vmatprep.subr.bf16.mxu0 0
        %737 = vmatpush1.bf16.xpose.msra.mxu0 0
        %738 = vmatprep.mubr.bf16.mxu0 0
        %739 = vmatmul.mubr.bf16.gmra.mrb[0].mxu0 %v701
        %v740 = vpop.f32.mrb[0].mxu0
        %v741 = vadd.f32 %v695, %v740
        %v742 = vpop.f32.mrb[0].mxu0
        %v743 = vpop.f32.mrb[0].mxu0
        %v744 = vpop.f32.mrb[0].mxu0
        %745 = vdwg.mxu0
        %v746 = vsel %vm699, %v741, -inf
        %747 = vmax.xlane.f32.xlu0 %v746
        %v748 = vpop.xlane.xlu0 %747
        %v749 = vsub.f32 %v741, %v748
        %v750 = vmul.f32 %v749, 1.442695
        %v751 = vpow.pop %v750
        %v752 = vsel %vm699, %v751, 0.0
        %753 = vadd.xlane.f32.xlu0 %v752
        %v754 = vpop.xlane.xlu0 %753
        %v755 = vrcp.pop %v754
        %v756 = vmul.f32 %v751, %v755
        %757 = vst.msk [vmem:[%s583] sm:$0xff] %vm699, %v756
        %v758 = vpack.c.bf16 %v756, %v756
        %759 = vrot.lane.b32.xlu0 %v690, 64
        %v760 = vpop.permute.xlu0 %759
        %v762 = vsel %vm699, %v758, 0
        %vm764 = vcmask 1043456
        %v766 = vsel %vm764, %v760, 0
        %768 = vmatprep.subr.bf16.mxu0 0
        %769 = vmatpush1.bf16.msra.mxu0 %v766
        %770 = vmatprep.subr.bf16.mxu0 0
        %771 = vmatpush1.bf16.msra.mxu0 0
        %772 = vmatprep.subr.bf16.mxu0 0
        %773 = vmatpush1.bf16.msra.mxu0 0
        %774 = vmatprep.subr.bf16.mxu0 0
        %775 = vmatpush1.bf16.msra.mxu0 0
        %776 = vmatprep.subr.bf16.mxu0 0
        %777 = vmatpush1.bf16.msra.mxu0 0
        %778 = vmatprep.subr.bf16.mxu0 0
        %779 = vmatpush1.bf16.msra.mxu0 0
        %780 = vmatprep.subr.bf16.mxu0 0
        %781 = vmatpush1.bf16.msra.mxu0 0
        %782 = vmatprep.subr.bf16.mxu0 0
        %783 = vmatpush1.bf16.msra.mxu0 0
        %784 = vmatprep.subr.bf16.mxu0 0
        %785 = vmatpush1.bf16.msra.mxu0 0
        %786 = vmatprep.subr.bf16.mxu0 0
        %787 = vmatpush1.bf16.msra.mxu0 0
        %788 = vmatprep.subr.bf16.mxu0 0
        %789 = vmatpush1.bf16.msra.mxu0 0
        %790 = vmatprep.subr.bf16.mxu0 0
        %791 = vmatpush1.bf16.msra.mxu0 0
        %792 = vmatprep.subr.bf16.mxu0 0
        %793 = vmatpush1.bf16.msra.mxu0 0
        %794 = vmatprep.subr.bf16.mxu0 0
        %795 = vmatpush1.bf16.msra.mxu0 0
        %796 = vmatprep.subr.bf16.mxu0 0
        %797 = vmatpush1.bf16.msra.mxu0 0
        %798 = vmatprep.subr.bf16.mxu0 0
        %799 = vmatpush1.bf16.msra.mxu0 0
        %800 = vmatprep.mubr.bf16.mxu0 0
        %801 = vmatmul.mubr.bf16.gmra.mrb[0].mxu0 %v762
        %v802 = vpop.f32.mrb[0].mxu0
        %v803 = vadd.f32 0.0, %v802
        %v804 = vpop.f32.mrb[0].mxu0
        %v805 = vpop.f32.mrb[0].mxu0
        %v806 = vpop.f32.mrb[0].mxu0
        %807 = vdwg.mxu0
        %v808 = vpack.c.bf16 %v803, %v803
        %vm809 = vcmask 60416
        %810 = vst.msk [vmem:[#allocation2] sm:$0xf] %vm809, %v808
        %812 = vrot.lane.b32.xlu0 %v689, 120
        %v813 = vpop.permute.xlu0 %812
        %814 = vrot.lane.b32.xlu0 %v690, 88
        %v815 = vpop.permute.xlu0 %814
        %v817 = vsel %vm699, %v813, 0
        %v820 = vsel %vm699, %v815, 0
        %822 = vmatprep.subr.bf16.mxu0 0
        %823 = vmatpush1.bf16.xpose.msra.mxu0 %v820
        %824 = vmatprep.subr.bf16.mxu0 0
        %825 = vmatpush1.bf16.xpose.msra.mxu0 0
        %826 = vmatprep.subr.bf16.mxu0 0
        %827 = vmatpush1.bf16.xpose.msra.mxu0 0
        %828 = vmatprep.subr.bf16.mxu0 0
        %829 = vmatpush1.bf16.xpose.msra.mxu0 0
        %830 = vmatprep.subr.bf16.mxu0 0
        %831 = vmatpush1.bf16.xpose.msra.mxu0 0
        %832 = vmatprep.subr.bf16.mxu0 0
        %833 = vmatpush1.bf16.xpose.msra.mxu0 0
        %834 = vmatprep.subr.bf16.mxu0 0
        %835 = vmatpush1.bf16.xpose.msra.mxu0 0
        %836 = vmatprep.subr.bf16.mxu0 0
        %837 = vmatpush1.bf16.xpose.msra.mxu0 0
        %838 = vmatprep.subr.bf16.mxu0 0
        %839 = vmatpush1.bf16.xpose.msra.mxu0 0
        %840 = vmatprep.subr.bf16.mxu0 0
        %841 = vmatpush1.bf16.xpose.msra.mxu0 0
        %842 = vmatprep.subr.bf16.mxu0 0
        %843 = vmatpush1.bf16.xpose.msra.mxu0 0
        %844 = vmatprep.subr.bf16.mxu0 0
        %845 = vmatpush1.bf16.xpose.msra.mxu0 0
        %846 = vmatprep.subr.bf16.mxu0 0
        %847 = vmatpush1.bf16.xpose.msra.mxu0 0
        %848 = vmatprep.subr.bf16.mxu0 0
        %849 = vmatpush1.bf16.xpose.msra.mxu0 0
        %850 = vmatprep.subr.bf16.mxu0 0
        %851 = vmatpush1.bf16.xpose.msra.mxu0 0
        %852 = vmatprep.subr.bf16.mxu0 0
        %853 = vmatpush1.bf16.xpose.msra.mxu0 0
        %854 = vmatprep.mubr.bf16.mxu0 0
        %855 = vmatmul.mubr.bf16.gmra.mrb[0].mxu0 %v817
        %v856 = vpop.f32.mrb[0].mxu0
        %v857 = vadd.f32 %v695, %v856
        %v858 = vpop.f32.mrb[0].mxu0
        %v859 = vpop.f32.mrb[0].mxu0
        %v860 = vpop.f32.mrb[0].mxu0
        %861 = vdwg.mxu0
        %v862 = vsel %vm699, %v857, -inf
        %863 = vmax.xlane.f32.xlu0 %v862
        %v864 = vpop.xlane.xlu0 %863
        %v865 = vsub.f32 %v857, %v864
        %v866 = vmul.f32 %v865, 1.442695
        %v867 = vpow.pop %v866
        %v868 = vsel %vm699, %v867, 0.0
        %869 = vadd.xlane.f32.xlu0 %v868
        %v870 = vpop.xlane.xlu0 %869
        %v871 = vrcp.pop %v870
        %v872 = vmul.f32 %v867, %v871
        %s873 = scalar_lea.vmem %s583, 8 [#allocation13]
        %874 = vst.msk [vmem:[%s873] sm:$0xff] %vm699, %v872
        %v875 = vpack.c.bf16 %v872, %v872
        %876 = vrot.lane.b32.xlu0 %v690, 56
        %v877 = vpop.permute.xlu0 %876
        %v879 = vsel %vm699, %v875, 0
        %v882 = vsel %vm764, %v877, 0
        %884 = vmatprep.subr.bf16.mxu0 0
        %885 = vmatpush1.bf16.msra.mxu0 %v882
        %886 = vmatprep.subr.bf16.mxu0 0
        %887 = vmatpush1.bf16.msra.mxu0 0
        %888 = vmatprep.subr.bf16.mxu0 0
        %889 = vmatpush1.bf16.msra.mxu0 0
        %890 = vmatprep.subr.bf16.mxu0 0
        %891 = vmatpush1.bf16.msra.mxu0 0
        %892 = vmatprep.subr.bf16.mxu0 0
        %893 = vmatpush1.bf16.msra.mxu0 0
        %894 = vmatprep.subr.bf16.mxu0 0
        %895 = vmatpush1.bf16.msra.mxu0 0
        %896 = vmatprep.subr.bf16.mxu0 0
        %897 = vmatpush1.bf16.msra.mxu0 0
        %898 = vmatprep.subr.bf16.mxu0 0
        %899 = vmatpush1.bf16.msra.mxu0 0
        %900 = vmatprep.subr.bf16.mxu0 0
        %901 = vmatpush1.bf16.msra.mxu0 0
        %902 = vmatprep.subr.bf16.mxu0 0
        %903 = vmatpush1.bf16.msra.mxu0 0
        %904 = vmatprep.subr.bf16.mxu0 0
        %905 = vmatpush1.bf16.msra.mxu0 0
        %906 = vmatprep.subr.bf16.mxu0 0
        %907 = vmatpush1.bf16.msra.mxu0 0
        %908 = vmatprep.subr.bf16.mxu0 0
        %909 = vmatpush1.bf16.msra.mxu0 0
        %910 = vmatprep.subr.bf16.mxu0 0
        %911 = vmatpush1.bf16.msra.mxu0 0
        %912 = vmatprep.subr.bf16.mxu0 0
        %913 = vmatpush1.bf16.msra.mxu0 0
        %914 = vmatprep.subr.bf16.mxu0 0
        %915 = vmatpush1.bf16.msra.mxu0 0
        %916 = vmatprep.mubr.bf16.mxu0 0
        %917 = vmatmul.mubr.bf16.gmra.mrb[0].mxu0 %v879
        %v918 = vpop.f32.mrb[0].mxu0
        %v919 = vadd.f32 0.0, %v918
        %v920 = vpop.f32.mrb[0].mxu0
        %v921 = vpop.f32.mrb[0].mxu0
        %v922 = vpop.f32.mrb[0].mxu0
        %923 = vdwg.mxu0
        %v924 = vpack.c.bf16 %v919, %v919
        %v926 = vunpack.c.l.b16 %v924
        %v927 = vpack.c.b16 %v926, %v926
        %928 = vrot.lane.b32.xlu0 %v927, 8
        %v929 = vpop.permute.xlu0 %928
        %vm931 = vcmask 126016
        %932 = vst.msk [vmem:[#allocation2] sm:$0xf] %vm931, %v929
        %933 = vrot.lane.b32.xlu0 %v689, 112
        %v934 = vpop.permute.xlu0 %933
        %935 = vrot.lane.b32.xlu0 %v690, 80
        %v936 = vpop.permute.xlu0 %935
        %v938 = vsel %vm699, %v934, 0
        %v941 = vsel %vm699, %v936, 0
        %943 = vmatprep.subr.bf16.mxu0 0
        %944 = vmatpush1.bf16.xpose.msra.mxu0 %v941
        %945 = vmatprep.subr.bf16.mxu0 0
        %946 = vmatpush1.bf16.xpose.msra.mxu0 0
        %947 = vmatprep.subr.bf16.mxu0 0
        %948 = vmatpush1.bf16.xpose.msra.mxu0 0
        %949 = vmatprep.subr.bf16.mxu0 0
        %950 = vmatpush1.bf16.xpose.msra.mxu0 0
        %951 = vmatprep.subr.bf16.mxu0 0
        %952 = vmatpush1.bf16.xpose.msra.mxu0 0
        %953 = vmatprep.subr.bf16.mxu0 0
        %954 = vmatpush1.bf16.xpose.msra.mxu0 0
        %955 = vmatprep.subr.bf16.mxu0 0
        %956 = vmatpush1.bf16.xpose.msra.mxu0 0
        %957 = vmatprep.subr.bf16.mxu0 0
        %958 = vmatpush1.bf16.xpose.msra.mxu0 0
        %959 = vmatprep.subr.bf16.mxu0 0
        %960 = vmatpush1.bf16.xpose.msra.mxu0 0
        %961 = vmatprep.subr.bf16.mxu0 0
        %962 = vmatpush1.bf16.xpose.msra.mxu0 0
        %963 = vmatprep.subr.bf16.mxu0 0
        %964 = vmatpush1.bf16.xpose.msra.mxu0 0
        %965 = vmatprep.subr.bf16.mxu0 0
        %966 = vmatpush1.bf16.xpose.msra.mxu0 0
        %967 = vmatprep.subr.bf16.mxu0 0
        %968 = vmatpush1.bf16.xpose.msra.mxu0 0
        %969 = vmatprep.subr.bf16.mxu0 0
        %970 = vmatpush1.bf16.xpose.msra.mxu0 0
        %971 = vmatprep.subr.bf16.mxu0 0
        %972 = vmatpush1.bf16.xpose.msra.mxu0 0
        %973 = vmatprep.subr.bf16.mxu0 0
        %974 = vmatpush1.bf16.xpose.msra.mxu0 0
        %975 = vmatprep.mubr.bf16.mxu0 0
        %976 = vmatmul.mubr.bf16.gmra.mrb[0].mxu0 %v938
        %v977 = vpop.f32.mrb[0].mxu0
        %v978 = vadd.f32 %v695, %v977
        %v979 = vpop.f32.mrb[0].mxu0
        %v980 = vpop.f32.mrb[0].mxu0
        %v981 = vpop.f32.mrb[0].mxu0
        %982 = vdwg.mxu0
        %v983 = vsel %vm699, %v978, -inf
        %984 = vmax.xlane.f32.xlu0 %v983
        %v985 = vpop.xlane.xlu0 %984
        %v986 = vsub.f32 %v978, %v985
        %v987 = vmul.f32 %v986, 1.442695
        %v988 = vpow.pop %v987
        %v989 = vsel %vm699, %v988, 0.0
        %990 = vadd.xlane.f32.xlu0 %v989
        %v991 = vpop.xlane.xlu0 %990
        %v992 = vrcp.pop %v991
        %v993 = vmul.f32 %v988, %v992
        %s994 = scalar_lea.vmem %s583, 16 [#allocation13]
        %995 = vst.msk [vmem:[%s994] sm:$0xff] %vm699, %v993
        %v996 = vpack.c.bf16 %v993, %v993
        %997 = vrot.lane.b32.xlu0 %v690, 48
        %v998 = vpop.permute.xlu0 %997
        %v1000 = vsel %vm699, %v996, 0
        %v1003 = vsel %vm764, %v998, 0
        %1005 = vmatprep.subr.bf16.mxu0 0
        %1006 = vmatpush1.bf16.msra.mxu0 %v1003
        %1007 = vmatprep.subr.bf16.mxu0 0
        %1008 = vmatpush1.bf16.msra.mxu0 0
        %1009 = vmatprep.subr.bf16.mxu0 0
        %1010 = vmatpush1.bf16.msra.mxu0 0
        %1011 = vmatprep.subr.bf16.mxu0 0
        %1012 = vmatpush1.bf16.msra.mxu0 0
        %1013 = vmatprep.subr.bf16.mxu0 0
        %1014 = vmatpush1.bf16.msra.mxu0 0
        %1015 = vmatprep.subr.bf16.mxu0 0
        %1016 = vmatpush1.bf16.msra.mxu0 0
        %1017 = vmatprep.subr.bf16.mxu0 0
        %1018 = vmatpush1.bf16.msra.mxu0 0
        %1019 = vmatprep.subr.bf16.mxu0 0
        %1020 = vmatpush1.bf16.msra.mxu0 0
        %1021 = vmatprep.subr.bf16.mxu0 0
        %1022 = vmatpush1.bf16.msra.mxu0 0
        %1023 = vmatprep.subr.bf16.mxu0 0
        %1024 = vmatpush1.bf16.msra.mxu0 0
        %1025 = vmatprep.subr.bf16.mxu0 0
        %1026 = vmatpush1.bf16.msra.mxu0 0
        %1027 = vmatprep.subr.bf16.mxu0 0
        %1028 = vmatpush1.bf16.msra.mxu0 0
        %1029 = vmatprep.subr.bf16.mxu0 0
        %1030 = vmatpush1.bf16.msra.mxu0 0
        %1031 = vmatprep.subr.bf16.mxu0 0
        %1032 = vmatpush1.bf16.msra.mxu0 0
        %1033 = vmatprep.subr.bf16.mxu0 0
        %1034 = vmatpush1.bf16.msra.mxu0 0
        %1035 = vmatprep.subr.bf16.mxu0 0
        %1036 = vmatpush1.bf16.msra.mxu0 0
        %1037 = vmatprep.mubr.bf16.mxu0 0
        %1038 = vmatmul.mubr.bf16.gmra.mrb[0].mxu0 %v1000
        %v1039 = vpop.f32.mrb[0].mxu0
        %v1040 = vadd.f32 0.0, %v1039
        %v1041 = vpop.f32.mrb[0].mxu0
        %v1042 = vpop.f32.mrb[0].mxu0
        %v1043 = vpop.f32.mrb[0].mxu0
        %1044 = vdwg.mxu0
        %v1045 = vpack.c.bf16 %v1040, %v1040
        %v1047 = vunpack.c.l.b16 %v1045
        %v1048 = vpack.c.b16 %v1047, %v1047
        %1049 = vrot.lane.b32.xlu0 %v1048, 16
        %v1050 = vpop.permute.xlu0 %1049
        %vm1052 = vcmask 191616
        %1053 = vst.msk [vmem:[#allocation2] sm:$0xf] %vm1052, %v1050
        %1054 = vrot.lane.b32.xlu0 %v689, 104
        %v1055 = vpop.permute.xlu0 %1054
        %1056 = vrot.lane.b32.xlu0 %v690, 72
        %v1057 = vpop.permute.xlu0 %1056
        %v1059 = vsel %vm699, %v1055, 0
        %v1062 = vsel %vm699, %v1057, 0
        %1064 = vmatprep.subr.bf16.mxu0 0
        %1065 = vmatpush1.bf16.xpose.msra.mxu0 %v1062
        %1066 = vmatprep.subr.bf16.mxu0 0
        %1067 = vmatpush1.bf16.xpose.msra.mxu0 0
        %1068 = vmatprep.subr.bf16.mxu0 0
        %1069 = vmatpush1.bf16.xpose.msra.mxu0 0
        %1070 = vmatprep.subr.bf16.mxu0 0
        %1071 = vmatpush1.bf16.xpose.msra.mxu0 0
        %1072 = vmatprep.subr.bf16.mxu0 0
        %1073 = vmatpush1.bf16.xpose.msra.mxu0 0
        %1074 = vmatprep.subr.bf16.mxu0 0
        %1075 = vmatpush1.bf16.xpose.msra.mxu0 0
        %1076 = vmatprep.subr.bf16.mxu0 0
        %1077 = vmatpush1.bf16.xpose.msra.mxu0 0
        %1078 = vmatprep.subr.bf16.mxu0 0
        %1079 = vmatpush1.bf16.xpose.msra.mxu0 0
        %1080 = vmatprep.subr.bf16.mxu0 0
        %1081 = vmatpush1.bf16.xpose.msra.mxu0 0
        %1082 = vmatprep.subr.bf16.mxu0 0
        %1083 = vmatpush1.bf16.xpose.msra.mxu0 0
        %1084 = vmatprep.subr.bf16.mxu0 0
        %1085 = vmatpush1.bf16.xpose.msra.mxu0 0
        %1086 = vmatprep.subr.bf16.mxu0 0
        %1087 = vmatpush1.bf16.xpose.msra.mxu0 0
        %1088 = vmatprep.subr.bf16.mxu0 0
        %1089 = vmatpush1.bf16.xpose.msra.mxu0 0
        %1090 = vmatprep.subr.bf16.mxu0 0
        %1091 = vmatpush1.bf16.xpose.msra.mxu0 0
        %1092 = vmatprep.subr.bf16.mxu0 0
        %1093 = vmatpush1.bf16.xpose.msra.mxu0 0
        %1094 = vmatprep.subr.bf16.mxu0 0
        %1095 = vmatpush1.bf16.xpose.msra.mxu0 0
        %1096 = vmatprep.mubr.bf16.mxu0 0
        %1097 = vmatmul.mubr.bf16.gmra.mrb[0].mxu0 %v1059
        %v1098 = vpop.f32.mrb[0].mxu0
        %v1099 = vadd.f32 %v695, %v1098
        %v1100 = vpop.f32.mrb[0].mxu0
        %v1101 = vpop.f32.mrb[0].mxu0
        %v1102 = vpop.f32.mrb[0].mxu0
        %1103 = vdwg.mxu0
        %v1104 = vsel %vm699, %v1099, -inf
        %1105 = vmax.xlane.f32.xlu0 %v1104
        %v1106 = vpop.xlane.xlu0 %1105
        %v1107 = vsub.f32 %v1099, %v1106
        %v1108 = vmul.f32 %v1107, 1.442695
        %v1109 = vpow.pop %v1108
        %v1110 = vsel %vm699, %v1109, 0.0
        %1111 = vadd.xlane.f32.xlu0 %v1110
        %v1112 = vpop.xlane.xlu0 %1111
        %v1113 = vrcp.pop %v1112
        %v1114 = vmul.f32 %v1109, %v1113
        %s1115 = scalar_lea.vmem %s583, 24 [#allocation13]
        %1116 = vst.msk [vmem:[%s1115] sm:$0xff] %vm699, %v1114
        %v1117 = vpack.c.bf16 %v1114, %v1114
        %1118 = vrot.lane.b32.xlu0 %v690, 40
        %v1119 = vpop.permute.xlu0 %1118
        %v1121 = vsel %vm699, %v1117, 0
        %v1124 = vsel %vm764, %v1119, 0
        %1126 = vmatprep.subr.bf16.mxu0 0
        %1127 = vmatpush1.bf16.msra.mxu0 %v1124
        %1128 = vmatprep.subr.bf16.mxu0 0
        %1129 = vmatpush1.bf16.msra.mxu0 0
        %1130 = vmatprep.subr.bf16.mxu0 0
        %1131 = vmatpush1.bf16.msra.mxu0 0
        %1132 = vmatprep.subr.bf16.mxu0 0
        %1133 = vmatpush1.bf16.msra.mxu0 0
        %1134 = vmatprep.subr.bf16.mxu0 0
        %1135 = vmatpush1.bf16.msra.mxu0 0
        %1136 = vmatprep.subr.bf16.mxu0 0
        %1137 = vmatpush1.bf16.msra.mxu0 0
        %1138 = vmatprep.subr.bf16.mxu0 0
        %1139 = vmatpush1.bf16.msra.mxu0 0
        %1140 = vmatprep.subr.bf16.mxu0 0
        %1141 = vmatpush1.bf16.msra.mxu0 0
        %1142 = vmatprep.subr.bf16.mxu0 0
        %1143 = vmatpush1.bf16.msra.mxu0 0
        %1144 = vmatprep.subr.bf16.mxu0 0
        %1145 = vmatpush1.bf16.msra.mxu0 0
        %1146 = vmatprep.subr.bf16.mxu0 0
        %1147 = vmatpush1.bf16.msra.mxu0 0
        %1148 = vmatprep.subr.bf16.mxu0 0
        %1149 = vmatpush1.bf16.msra.mxu0 0
        %1150 = vmatprep.subr.bf16.mxu0 0
        %1151 = vmatpush1.bf16.msra.mxu0 0
        %1152 = vmatprep.subr.bf16.mxu0 0
        %1153 = vmatpush1.bf16.msra.mxu0 0
        %1154 = vmatprep.subr.bf16.mxu0 0
        %1155 = vmatpush1.bf16.msra.mxu0 0
        %1156 = vmatprep.subr.bf16.mxu0 0
        %1157 = vmatpush1.bf16.msra.mxu0 0
        %1158 = vmatprep.mubr.bf16.mxu0 0
        %1159 = vmatmul.mubr.bf16.gmra.mrb[0].mxu0 %v1121
        %v1160 = vpop.f32.mrb[0].mxu0
        %v1161 = vadd.f32 0.0, %v1160
        %v1162 = vpop.f32.mrb[0].mxu0
        %v1163 = vpop.f32.mrb[0].mxu0
        %v1164 = vpop.f32.mrb[0].mxu0
        %1165 = vdwg.mxu0
        %v1166 = vpack.c.bf16 %v1161, %v1161
        %v1168 = vunpack.c.l.b16 %v1166
        %v1169 = vpack.c.b16 %v1168, %v1168
        %1170 = vrot.lane.b32.xlu0 %v1169, 24
        %v1171 = vpop.permute.xlu0 %1170
        %vm1173 = vcmask 257216
        %1174 = vst.msk [vmem:[#allocation2] sm:$0xf] %vm1173, %v1171
        %v1175 = vld [vmem:[#allocation2] sm:$0xf]
        %v1176 = vld [vmem:[%s6] sm:$0xf]
        %v1177 = vld [vmem:[%s6 + $0x4] sm:$0xf]
        %v1178 = vld [vmem:[%s6 + $0x8] sm:$0xf]
        %v1179 = vld [vmem:[%s6 + $0xc] sm:$0xf]
        %v1184 = vunpack.c.l.b16 %v1176
        %v1185 = vunpack.c.l.b16 %v1177
        %v1186 = vunpack.c.l.b16 %v1178
        %v1187 = vunpack.c.l.b16 %v1179
        %v1188 = vpack.c.b16 %v1185, %v1184
        %v1189 = vpack.c.b16 %v1187, %v1186
        %v1193 = vsel %vm592, %v1175, 0
        %1195 = vmatprep.subr.bf16.mxu0 0
        %1196 = vmatpush1.bf16.msra.mxu0 %v1188
        %1197 = vmatprep.subr.bf16.mxu0 0
        %1198 = vmatpush1.bf16.msra.mxu0 %v1189
        %1199 = vmatprep.subr.bf16.mxu0 0
        %1200 = vmatpush1.bf16.msra.mxu0 0
        %1201 = vmatprep.subr.bf16.mxu0 0
        %1202 = vmatpush1.bf16.msra.mxu0 0
        %1203 = vmatprep.subr.bf16.mxu0 0
        %1204 = vmatpush1.bf16.msra.mxu0 0
        %1205 = vmatprep.subr.bf16.mxu0 0
        %1206 = vmatpush1.bf16.msra.mxu0 0
        %1207 = vmatprep.subr.bf16.mxu0 0
        %1208 = vmatpush1.bf16.msra.mxu0 0
        %1209 = vmatprep.subr.bf16.mxu0 0
        %1210 = vmatpush1.bf16.msra.mxu0 0
        %1211 = vmatprep.subr.bf16.mxu0 0
        %1212 = vmatpush1.bf16.msra.mxu0 0
        %1213 = vmatprep.subr.bf16.mxu0 0
        %1214 = vmatpush1.bf16.msra.mxu0 0
        %1215 = vmatprep.subr.bf16.mxu0 0
        %1216 = vmatpush1.bf16.msra.mxu0 0
        %1217 = vmatprep.subr.bf16.mxu0 0
        %1218 = vmatpush1.bf16.msra.mxu0 0
        %1219 = vmatprep.subr.bf16.mxu0 0
        %1220 = vmatpush1.bf16.msra.mxu0 0
        %1221 = vmatprep.subr.bf16.mxu0 0
        %1222 = vmatpush1.bf16.msra.mxu0 0
        %1223 = vmatprep.subr.bf16.mxu0 0
        %1224 = vmatpush1.bf16.msra.mxu0 0
        %1225 = vmatprep.subr.bf16.mxu0 0
        %1226 = vmatpush1.bf16.msra.mxu0 0
        %1227 = vmatprep.mubr.bf16.mxu0 0
        %1228 = vmatmul.mubr.bf16.gmra.mrb[0].mxu0 %v1193
        %v1229 = vpop.f32.mrb[0].mxu0
        %v1230 = vadd.f32 0.0, %v1229
        %v1231 = vpop.f32.mrb[0].mxu0
        %v1232 = vpop.f32.mrb[0].mxu0
        %v1233 = vpop.f32.mrb[0].mxu0
        %1234 = vdwg.mxu0
        %v1235 = vadd.f32 %v589, %v1230
        %v1236 = vld [vmem:[#allocation8] sm:$0x1]
        %v1238 = vlaneseq
        %v1239 = vshrl.u32 %v1238, 7
        %v1240 = vsub.s32 0, %v1239
        %v1241 = vrot.slane %v1236, %v1240
        %v1243 = vadd.f32 %v1235, %v1241
        %v1244 = vld [vmem:[#allocation9] sm:$0x1]
        %v1245 = vld [vmem:[#allocation11] sm:$0x1]
        %v1246 = vsel %vm592, %v1243, 0.0
        %1247 = vadd.xlane.f32.xlu0 %v1246
        %v1248 = vpop.xlane.xlu0 %1247
        %v1249 = vmul.f32 %v1248, %v596
        %v1250 = vsub.f32 %v1243, %v1249
        %v1251 = vmul.f32 %v1250, %v1250
        %v1252 = vsel %vm592, %v1251, 0.0
        %1253 = vadd.xlane.f32.xlu0 %v1252
        %v1254 = vpop.xlane.xlu0 %1253
        %v1255 = vmul.f32 %v1254, %v596
        %v1256 = vadd.f32 %v1255, 1e-05
        %v1257 = vrsqrt.pop %v1256
        %v1258 = vmul.f32 %v1250, %v1257
        %v1260 = vlaneseq
        %v1261 = vshrl.u32 %v1260, 7
        %v1262 = vsub.s32 0, %v1261
        %v1263 = vrot.slane %v1244, %v1262
        %v1265 = vmul.f32 %v1258, %v1263
        %v1267 = vlaneseq
        %v1268 = vshrl.u32 %v1267, 7
        %v1269 = vsub.s32 0, %v1268
        %v1270 = vrot.slane %v1245, %v1269
        %v1272 = vadd.f32 %v1265, %v1270
        %v1273 = vpack.c.bf16 %v1272, %v1272
        %v1274 = vld [vmem:[%s10] sm:$0xf]
        %v1275 = vld [vmem:[%s10 + $0x4] sm:$0xf]
        %v1276 = vld [vmem:[%s10 + $0x8] sm:$0xf]
        %v1277 = vld [vmem:[%s10 + $0xc] sm:$0xf]
        %v1278 = vld [vmem:[%s11] sm:$0x1]
        %v1280 = vlaneseq
        %v1281 = vshrl.u32 %v1280, 7
        %v1282 = vsub.s32 0, %v1281
        %v1283 = vrot.slane %v1278, %v1282
        %v1289 = vunpack.c.l.b16 %v1274
        %v1290 = vunpack.c.l.b16 %v1275
        %v1291 = vunpack.c.l.b16 %v1276
        %v1292 = vunpack.c.l.b16 %v1277
        %v1293 = vpack.c.b16 %v1290, %v1289
        %v1294 = vpack.c.b16 %v1292, %v1291
        %v1298 = vsel %vm592, %v1273, 0
        %1300 = vmatprep.subr.bf16.mxu0 0
        %1301 = vmatpush1.bf16.msra.mxu0 %v1293
        %1302 = vmatprep.subr.bf16.mxu0 0
        %1303 = vmatpush1.bf16.msra.mxu0 %v1294
        %1304 = vmatprep.subr.bf16.mxu0 0
        %1305 = vmatpush1.bf16.msra.mxu0 0
        %1306 = vmatprep.subr.bf16.mxu0 0
        %1307 = vmatpush1.bf16.msra.mxu0 0
        %1308 = vmatprep.subr.bf16.mxu0 0
        %1309 = vmatpush1.bf16.msra.mxu0 0
        %1310 = vmatprep.subr.bf16.mxu0 0
        %1311 = vmatpush1.bf16.msra.mxu0 0
        %1312 = vmatprep.subr.bf16.mxu0 0
        %1313 = vmatpush1.bf16.msra.mxu0 0
        %1314 = vmatprep.subr.bf16.mxu0 0
        %1315 = vmatpush1.bf16.msra.mxu0 0
        %1316 = vmatprep.subr.bf16.mxu0 0
        %1317 = vmatpush1.bf16.msra.mxu0 0
        %1318 = vmatprep.subr.bf16.mxu0 0
        %1319 = vmatpush1.bf16.msra.mxu0 0
        %1320 = vmatprep.subr.bf16.mxu0 0
        %1321 = vmatpush1.bf16.msra.mxu0 0
        %1322 = vmatprep.subr.bf16.mxu0 0
        %1323 = vmatpush1.bf16.msra.mxu0 0
        %1324 = vmatprep.subr.bf16.mxu0 0
        %1325 = vmatpush1.bf16.msra.mxu0 0
        %1326 = vmatprep.subr.bf16.mxu0 0
        %1327 = vmatpush1.bf16.msra.mxu0 0
        %1328 = vmatprep.subr.bf16.mxu0 0
        %1329 = vmatpush1.bf16.msra.mxu0 0
        %1330 = vmatprep.subr.bf16.mxu0 0
        %1331 = vmatpush1.bf16.msra.mxu0 0
        %1332 = vmatprep.mubr.bf16.mxu0 0
        %1333 = vmatmul.mubr.bf16.gmra.mrb[0].mxu0 %v1298
        %v1334 = vpop.f32.mrb[0].mxu0
        %v1335 = vadd.f32 %v1283, %v1334
        %v1336 = vpop.f32.mrb[0].mxu0
        %v1337 = vpop.f32.mrb[0].mxu0
        %v1338 = vpop.f32.mrb[0].mxu0
        %1339 = vdwg.mxu0
        %v1340 = vmax.f32 %v1335, 0.0
        %v1341 = vpack.c.bf16 %v1340, %v1340
        %v1342 = vld [vmem:[%s12] sm:$0xf]
        %v1343 = vld [vmem:[%s12 + $0x4] sm:$0xf]
        %v1344 = vld [vmem:[%s12 + $0x8] sm:$0xf]
        %v1345 = vld [vmem:[%s12 + $0xc] sm:$0xf]
        %v1346 = vld [vmem:[%s12 + $0x10] sm:$0xf]
        %v1347 = vld [vmem:[%s12 + $0x14] sm:$0xf]
        %v1348 = vld [vmem:[%s12 + $0x18] sm:$0xf]
        %v1349 = vld [vmem:[%s12 + $0x1c] sm:$0xf]
        %v1350 = vld [vmem:[%s13] sm:$0x1]
        %v1352 = vlaneseq
        %v1353 = vshrl.u32 %v1352, 7
        %v1354 = vsub.s32 0, %v1353
        %v1355 = vrot.slane %v1350, %v1354
        %v1365 = vunpack.c.l.b16 %v1342
        %v1366 = vunpack.c.l.b16 %v1343
        %v1367 = vunpack.c.l.b16 %v1344
        %v1368 = vunpack.c.l.b16 %v1345
        %v1369 = vunpack.c.l.b16 %v1346
        %v1370 = vunpack.c.l.b16 %v1347
        %v1371 = vunpack.c.l.b16 %v1348
        %v1372 = vunpack.c.l.b16 %v1349
        %v1373 = vpack.c.b16 %v1366, %v1365
        %v1374 = vpack.c.b16 %v1368, %v1367
        %v1375 = vpack.c.b16 %v1370, %v1369
        %v1376 = vpack.c.b16 %v1372, %v1371
        %vm1381 = vcmask 523264
        %v1383 = vsel %vm1381, %v1341, 0
        %1385 = vmatprep.subr.bf16.mxu0 0
        %1386 = vmatpush1.bf16.msra.mxu0 %v1373
        %1387 = vmatprep.subr.bf16.mxu0 0
        %1388 = vmatpush1.bf16.msra.mxu0 %v1374
        %1389 = vmatprep.subr.bf16.mxu0 0
        %1390 = vmatpush1.bf16.msra.mxu0 %v1375
        %1391 = vmatprep.subr.bf16.mxu0 0
        %1392 = vmatpush1.bf16.msra.mxu0 %v1376
        %1393 = vmatprep.subr.bf16.mxu0 0
        %1394 = vmatpush1.bf16.msra.mxu0 0
        %1395 = vmatprep.subr.bf16.mxu0 0
        %1396 = vmatpush1.bf16.msra.mxu0 0
        %1397 = vmatprep.subr.bf16.mxu0 0
        %1398 = vmatpush1.bf16.msra.mxu0 0
        %1399 = vmatprep.subr.bf16.mxu0 0
        %1400 = vmatpush1.bf16.msra.mxu0 0
        %1401 = vmatprep.subr.bf16.mxu0 0
        %1402 = vmatpush1.bf16.msra.mxu0 0
        %1403 = vmatprep.subr.bf16.mxu0 0
        %1404 = vmatpush1.bf16.msra.mxu0 0
        %1405 = vmatprep.subr.bf16.mxu0 0
        %1406 = vmatpush1.bf16.msra.mxu0 0
        %1407 = vmatprep.subr.bf16.mxu0 0
        %1408 = vmatpush1.bf16.msra.mxu0 0
        %1409 = vmatprep.subr.bf16.mxu0 0
        %1410 = vmatpush1.bf16.msra.mxu0 0
        %1411 = vmatprep.subr.bf16.mxu0 0
        %1412 = vmatpush1.bf16.msra.mxu0 0
        %1413 = vmatprep.subr.bf16.mxu0 0
        %1414 = vmatpush1.bf16.msra.mxu0 0
        %1415 = vmatprep.subr.bf16.mxu0 0
        %1416 = vmatpush1.bf16.msra.mxu0 0
        %1417 = vmatprep.mubr.bf16.mxu0 0
        %1418 = vmatmul.mubr.bf16.gmra.mrb[0].mxu0 %v1383
        %v1419 = vpop.f32.mrb[0].mxu0
        %v1420 = vadd.f32 %v1355, %v1419
        %v1421 = vpop.f32.mrb[0].mxu0
        %v1422 = vpop.f32.mrb[0].mxu0
        %v1423 = vpop.f32.mrb[0].mxu0
        %1424 = vdwg.mxu0
        %v1425 = vadd.f32 %v1243, %v1420
        %1426 = vst.msk [vmem:[%s576] sm:$0xff] %vm592, %v1425
        %s1427 = sand.u32 %s350, 1
        %s1428 = scalar_lea.sflag [#allocation5], %s1427
        %s1429 = sand.u32 %s350, 1
        %s1430 = smul.addr %s1429, 8
        %s1431 = scalar_lea.vmem [#allocation12], %s1430
        %s1432 = sand.u32 %s376, 1
        %s1433 = scalar_lea.sflag [#allocation14], %s1432
        %s1434 = sand.u32 %s376, 1
        %s1435 = smul.addr %s1434, 32
        %s1436 = scalar_lea.vmem [#allocation13], %s1435
        // Predicated region
        $region97: #{tpu_custom_call.1} parent=75 // pred_check
          %p1437 = pneg %p360
        $region98: #{tpu_custom_call.1} parent=75 // pred_check_branch
          %1439 = sbr.rel (%p1437) target = $region100
        $region99: #{tpu_custom_call.1} parent=75 // pred_region
          %s1441 = ssub.s32 128, 128
          %1442 = vsyncadd %s1428, %s1441
          %s1443 = smul.addr %s38, 128
          %s1444 = scalar_lea.hbm %s14, %s1443
          %s1446 = sshll.u32 %s1431, 4
          %s1447 = int_to_ptr.vmem [resolvable:$true] %s1446
          %1449 = dma.vmem_to_hbm [thread:$0]  %s1447, 128, %s1444, %s1428
        $region100: #{tpu_custom_call.1} parent=75 // pred_fallthru
          _
        // Predicated region
        $region101: #{tpu_custom_call.1} parent=75 // pred_check
          %p1450 = pneg %p386
        $region102: #{tpu_custom_call.1} parent=75 // pred_check_branch
          %1452 = sbr.rel (%p1450) target = $region104
        $region103: #{tpu_custom_call.1} parent=75 // pred_region
          %s1454 = ssub.s32 512, 512
          %1455 = vsyncadd %s1433, %s1454
          %s1456 = smul.addr %s38, 4
          %s1457 = smul.addr %s1456, 128
          %s1458 = scalar_lea.hbm %s15, %s1457
          %s1459 = sshll.u32 %s1436, 4
          %s1460 = int_to_ptr.vmem [resolvable:$true] %s1459
          %1465 = dma.vmem_to_hbm [thread:$0]  %s1460, 512, %s1458, %s1433, 128, 128, 8
        $region104: #{tpu_custom_call.1} parent=75 // pred_fallthru
          _
      $region76: #{tpu_custom_call.1} parent=5 // pred_fallthru
        _
      %p1466 = scmp.le.s32.totalorder 2, %s33
      // Predicated region
      $region105: #{tpu_custom_call.1} parent=5 // pred_check
        %p1467 = pneg %p1466
      $region106: #{tpu_custom_call.1} parent=5 // pred_check_branch
        %1469 = sbr.rel (%p1467) target = $region108
      $region107: #{tpu_custom_call.1} parent=5 // pred_region
        %s1470 = ssub.s32 %s33, 2
        // Predicated region
        $region109: #{tpu_custom_call.1} parent=107 // pred_check
          %p1471 = pneg %p366
        $region110: #{tpu_custom_call.1} parent=107 // pred_check_branch
          %1473 = sbr.rel (%p1471) target = $region112
        $region111: #{tpu_custom_call.1} parent=107 // pred_region
          %s1474 = sand.u32 %s351, 1
          %s1475 = scalar_lea.sflag [#allocation5], %s1474
          %s1476 = sand.u32 %s351, 1
          %s1477 = smul.addr %s1476, 8
          %s1478 = scalar_lea.vmem [#allocation12], %s1477
          %1479 = dma.done %s1475, 128
        $region112: #{tpu_custom_call.1} parent=107 // pred_fallthru
          _
        // Predicated region
        $region113: #{tpu_custom_call.1} parent=107 // pred_check
          %p1480 = pneg %p392
        $region114: #{tpu_custom_call.1} parent=107 // pred_check_branch
          %1482 = sbr.rel (%p1480) target = $region116
        $region115: #{tpu_custom_call.1} parent=107 // pred_region
          %s1483 = sand.u32 %s377, 1
          %s1484 = scalar_lea.sflag [#allocation14], %s1483
          %s1485 = sand.u32 %s377, 1
          %s1486 = smul.addr %s1485, 32
          %s1487 = scalar_lea.vmem [#allocation13], %s1486
          %1488 = dma.done %s1484, 512
        $region116: #{tpu_custom_call.1} parent=107 // pred_fallthru
          _
      $region108: #{tpu_custom_call.1} parent=5 // pred_fallthru
        _
    $region6: #{tpu_custom_call.1} parent=1 // loop_footer
      %s37 = sadd.s32 1, %s33
    $region7: #{tpu_custom_call.1} parent=1 // loop_footer_branch
      %32 = sbr.rel target = $region3
    $region8: #{tpu_custom_call.1} parent=1 // loop_exit
      _
    %1489 = vsyncpa [#allocation4], 1
    %s1490 = scalar_lea.sflag [#allocation4], 1
    %1491 = vsyncpa %s1490, 1
    %1492 = vsyncpa [#allocation7], 1
    %1493 = vsyncpa [#allocation10], 1
    %1494 = vsyncpa [#allocation5], 1
    %s1495 = scalar_lea.sflag [#allocation5], 1
    %1496 = vsyncpa %s1495, 1
    %1497 = vsyncpa [#allocation14], 1
    %s1498 = scalar_lea.sflag [#allocation14], 1
    %1499 = vsyncpa %s1498, 1

</llo_original>
